<compile_context>
chip_gen: v7x
topology: tpu7x:2x2x1
jax: 0.10.0
libtpu: 0.0.40
codegen_flags: <defaults>
</compile_context>

<pallas_src>
import functools

import jax
import jax.numpy as jnp
from jax.experimental import pallas as pl
from jax.experimental.pallas import tpu as pltpu


def _round_up(n, m):
    return ((n + m - 1) // m) * m


def _choose_tile_t(T):
    """Token-tile size: minimize padded rows + per-grid-step overhead, prefer a
    grid of >= 2 steps (so the 'parallel' axis shards across v7x's 2 TensorCores),
    keep the sublane count a multiple of 16 (bf16 packing)."""
    best_t, best_cost = 16, None
    for t in (256, 128, 64, 32, 16):
        t_pad = _round_up(T, t)
        steps = t_pad // t
        cost = t_pad + 48 * steps          # padded work + ~per-step overhead
        if steps < 2 and T > 16:           # a 1-step grid leaves one v7x TC idle
            cost += 64
        if best_cost is None or cost < best_cost:
            best_t, best_cost = t, cost
    return best_t


# ----------------------------------------------------------------------------
# Fused kernel: routed experts (concatenated) + shared expert + add.
# Grid: (num_token_tiles,)  -- "parallel" so v7x megacore can shard it.
# ----------------------------------------------------------------------------
def _ffn_moe_fused_kernel(x_ref, g_ref, w1_ref, b1_ref, w2_ref, b2_ref,
                          ws1_ref, bs1_ref, ws2_ref, bs2_ref, o_ref):
    x16 = x_ref[...]                              # (Tt, H)  bf16 (pre-cast in wrapper)
    gates = g_ref[...]                            # (Tt, E)  f32 dense top-k gates

    E = gates.shape[-1]
    EDh = w1_ref.shape[-1]
    Dh = EDh // E

    # ---- routed experts: one concatenated fc1 over all experts ----
    h = jnp.dot(x16, w1_ref[...], preferred_element_type=jnp.float32)   # (Tt, E*Dh)
    h = jnp.maximum(h + b1_ref[...], 0.0)                               # bias + ReLU (f32)

    # Gate pre-scale per expert on the VPU.  Dh == 128, so each expert's column
    # block is lane-aligned; gates[:, e:e+1] is a cheap lane broadcast.  No MXU
    # gate-expansion matmul, no per-iteration iota/compare work.
    parts = []
    for e in range(E):                            # static unroll (E == 8)
        ge = gates[:, e:e + 1]                    # (Tt, 1) f32
        parts.append((h[:, e * Dh:(e + 1) * Dh] * ge).astype(jnp.bfloat16))
    h_scaled = jnp.concatenate(parts, axis=-1)    # (Tt, E*Dh) bf16

    # One concatenated fc2 over all experts (pure matmul accumulation).
    y = jnp.dot(h_scaled, w2_ref[...], preferred_element_type=jnp.float32)   # (Tt, H)
    # gated fc2 bias: sum_e gate[t,e] * b2_e == gates @ B2  (single-pass bf16 MXU)
    y = y + jnp.dot(gates.astype(jnp.bfloat16), b2_ref[...],
                    preferred_element_type=jnp.float32)

    # ---- shared expert (fused) + residual add ----
    hs = jnp.dot(x16, ws1_ref[...], preferred_element_type=jnp.float32)      # (Tt, Hs)
    hs = jnp.maximum(hs + bs1_ref[...], 0.0).astype(jnp.bfloat16)
    y = y + jnp.dot(hs, ws2_ref[...], preferred_element_type=jnp.float32) + bs2_ref[...]

    o_ref[...] = y.astype(o_ref.dtype)


def ffn_moe_fused(x_pad, gates_pad, w1c, b1c, w2c, b2m, ws1, bs1, ws2, bs2, *,
                  tile_t, out_dtype):
    T_pad, H = x_pad.shape
    E = gates_pad.shape[1]
    EDh = w1c.shape[1]
    Hs = ws1.shape[1]
    grid = (T_pad // tile_t,)
    # TODO(synk): mark the grid-invariant weight BlockSpecs single-buffered
    # (pipeline_mode=pl.Buffered(1)) once the target JAX version supports it on the
    # auto-pipelined pallas_call path; halves resident-weight VMEM (matters on v7x).
    # TODO(synk): re-derive vmem_limit_bytes / max tile_t per generation (v5e/v6e have
    # 128 MiB physical VMEM and could take tile_t=512; v7x is capped lower).
    return pl.pallas_call(
        _ffn_moe_fused_kernel,
        out_shape=jax.ShapeDtypeStruct((T_pad, H), out_dtype),
        grid=grid,
        in_specs=[
            pl.BlockSpec((tile_t, H), lambda i: (i, 0)),     # x tile    (bf16)
            pl.BlockSpec((tile_t, E), lambda i: (i, 0)),     # dense gates tile (f32)
            pl.BlockSpec((H, EDh), lambda i: (0, 0)),        # W1cat   (resident, bf16)
            pl.BlockSpec((1, EDh), lambda i: (0, 0)),        # b1cat   (f32)
            pl.BlockSpec((EDh, H), lambda i: (0, 0)),        # W2cat   (resident, bf16)
            pl.BlockSpec((E, H), lambda i: (0, 0)),          # B2      (E, H, bf16)
            pl.BlockSpec((H, Hs), lambda i: (0, 0)),         # Ws1     (resident, bf16)
            pl.BlockSpec((1, Hs), lambda i: (0, 0)),         # bs1     (f32)
            pl.BlockSpec((Hs, H), lambda i: (0, 0)),         # Ws2     (resident, bf16)
            pl.BlockSpec((1, H), lambda i: (0, 0)),          # bs2     (f32)
        ],
        out_specs=pl.BlockSpec((tile_t, H), lambda i: (i, 0)),
        compiler_params=pltpu.CompilerParams(
            dimension_semantics=("parallel",),               # megacore-shard token tiles
            vmem_limit_bytes=32 * 1024 * 1024,               # safe on v5e/v6e/v7x
        ),
    )(x_pad, gates_pad, w1c, b1c, w2c, b2m, ws1, bs1, ws2, bs2)


# ----------------------------------------------------------------------------
# Forward: routing glue in XLA (tiny), all heavy compute in one Pallas kernel.
# ----------------------------------------------------------------------------
@functools.partial(jax.jit, static_argnames=("top_k", "out_dtype"))
def ffn_moe_forward(x, kparams, top_k=2, out_dtype=jnp.float32):
    B, S, H = x.shape
    x_flat = x.reshape(-1, H)
    T = x_flat.shape[0]
    E = kparams["w_gate_t"].shape[1]

    # Gating: logits + softmax + top-k + renorm -> dense (T, E) gates.
    # Tiny ((T,H)@(H,E)); kept in XLA (f32) so top-k tie-breaking matches the framework.
    scores = jax.nn.softmax(x_flat @ kparams["w_gate_t"], axis=-1)
    topk_w, topk_idx = jax.lax.top_k(scores, top_k)
    topk_w = topk_w / (jnp.sum(topk_w, axis=-1, keepdims=True) + 1e-20)
    gates = jnp.sum(jax.nn.one_hot(topk_idx, E, dtype=jnp.float32)
                    * topk_w[..., None], axis=1)                        # (T, E)

    # x is only ever consumed as an MXU operand inside the kernel: stream it as bf16.
    x16 = x_flat.astype(jnp.bfloat16)

    # Token-tile selection: small padding, >=2 grid steps when possible (v7x megacore).
    tile_t = _choose_tile_t(T)
    T_pad = _round_up(T, tile_t)
    if T_pad != T:
        pad = T_pad - T
        x16 = jnp.pad(x16, ((0, pad), (0, 0)))
        gates = jnp.pad(gates, ((0, pad), (0, 0)))

    # TODO(synk): for large E with top_k << E, switch the routed path to a
    # scalar-prefetch compacted-active-expert grid instead of the dense concatenated
    # matmul (here E=8, top_k=2 and all expert weights fit VMEM, so dense is fine).
    # TODO(synk): optional int8 (v5e/v6e) / fp8 (v7x) weight quantization of the
    # resident matmul weights, gated behind the reference-tolerance checks below.
    y = ffn_moe_fused(x16, gates,
                      kparams["w1c"], kparams["b1c"],
                      kparams["w2c"], kparams["b2m"],
                      kparams["ws1"], kparams["bs1"],
                      kparams["ws2"], kparams["bs2"],
                      tile_t=tile_t, out_dtype=out_dtype)
    # Padded tokens produce a (discarded) shared-expert output; keep this slice.
    return y[:T].reshape(B, S, H)


# ----------------------------------------------------------------------------
# Parameter packing: concatenate expert weights; matmul weights in bf16.
# ----------------------------------------------------------------------------
def pack_params(p):
    E, H, Dh = p["w1"].shape
    return {
        "w_gate_t": p["w_gate_t"],                                              # (H, E) f32
        "w1c": jnp.transpose(p["w1"], (1, 0, 2)).reshape(H, E * Dh).astype(jnp.bfloat16),
        "b1c": p["b1"].reshape(1, E * Dh).astype(jnp.float32),
        "w2c": p["w2"].reshape(E * Dh, H).astype(jnp.bfloat16),
        "b2m": p["b2"].reshape(E, H).astype(jnp.bfloat16),                      # bf16 MXU operand
        "ws1": p["ws1"].astype(jnp.bfloat16),
        "bs1": p["bs1"].astype(jnp.float32),
        "ws2": p["ws2"].astype(jnp.bfloat16),
        "bs2": p["bs2"].astype(jnp.float32),
    }


# ----------------------------------------------------------------------------
# Pure-JAX reference.  matmul_dtype=f32 -> faithful module semantics;
# matmul_dtype=bf16 -> precision-matched to the kernel's mixed precision.
# ----------------------------------------------------------------------------
def ffn_moe_reference(x, params, top_k=2, matmul_dtype=jnp.float32):
    dt = matmul_dtype
    B, S, H = x.shape
    E = params["w_gate_t"].shape[1]
    xf = x.reshape(-1, H)
    scores = jax.nn.softmax(xf @ params["w_gate_t"], axis=-1)
    tw, ti = jax.lax.top_k(scores, top_k)
    tw = tw / (jnp.sum(tw, axis=-1, keepdims=True) + 1e-20)
    gates = jnp.sum(jax.nn.one_hot(ti, E, dtype=jnp.float32) * tw[..., None], axis=1)
    xd = xf.astype(dt)
    y = jnp.zeros_like(xf)
    for e in range(E):
        h = jnp.maximum(
            jnp.dot(xd, params["w1"][e].astype(dt), preferred_element_type=jnp.float32)
            + params["b1"][e, 0], 0.0)
        out = jnp.dot(h.astype(dt), params["w2"][e].astype(dt),
                      preferred_element_type=jnp.float32) + params["b2"][e, 0]
        y = y + gates[:, e:e + 1] * out
    hs = jnp.maximum(
        jnp.dot(xd, params["ws1"].astype(dt), preferred_element_type=jnp.float32)
        + params["bs1"][0], 0.0)
    y = y + jnp.dot(hs.astype(dt), params["ws2"].astype(dt),
                    preferred_element_type=jnp.float32) + params["bs2"][0]
    return y.reshape(B, S, H)


def init_params(key, hidden_size, n_experts, expert_hidden, shared_hidden):
    ks = jax.random.split(key, 9)
    s = lambda fan_in: 1.0 / jnp.sqrt(fan_in)
    return {
        # gate weight stored transposed: (H, E)  (PyTorch stores (E, H))
        "w_gate_t": jax.random.normal(ks[0], (hidden_size, n_experts), jnp.float32) * s(hidden_size),
        # routed experts, stacked: (E, H, Dh), (E, 1, Dh), (E, Dh, H), (E, 1, H)
        "w1": jax.random.normal(ks[1], (n_experts, hidden_size, expert_hidden), jnp.float32) * s(hidden_size),
        "b1": jax.random.normal(ks[2], (n_experts, 1, expert_hidden), jnp.float32) * 0.01,
        "w2": jax.random.normal(ks[3], (n_experts, expert_hidden, hidden_size), jnp.float32) * s(expert_hidden),
        "b2": jax.random.normal(ks[4], (n_experts, 1, hidden_size), jnp.float32) * 0.01,
        # shared expert
        "ws1": jax.random.normal(ks[5], (hidden_size, shared_hidden), jnp.float32) * s(hidden_size),
        "bs1": jax.random.normal(ks[6], (1, shared_hidden), jnp.float32) * 0.01,
        "ws2": jax.random.normal(ks[7], (shared_hidden, hidden_size), jnp.float32) * s(shared_hidden),
        "bs2": jax.random.normal(ks[8], (1, hidden_size), jnp.float32) * 0.01,
    }


if __name__ == "__main__":
    # Small shapes consistent with the module: hidden_size is a ctor arg (use 256),
    # routed-expert hidden=128 and shared-expert hidden=512 are hardcoded in FFNMoE.
    B, S, H = 2, 8, 256
    E, TOP_K, DH, HS = 8, 2, 128, 512

    key = jax.random.PRNGKey(0)
    k_x, k_p = jax.random.split(key)
    x = jax.random.normal(k_x, (B, S, H), jnp.float32)
    params = init_params(k_p, H, E, DH, HS)
    kparams = pack_params(params)

    out = ffn_moe_forward(x, kparams, top_k=TOP_K)
    out = jax.block_until_ready(out)
    assert out.shape == (B, S, H)
    assert out.dtype == jnp.float32

    # (1) precision-matched reference (bf16 matmul operands, f32 accumulation):
    ref_mp = ffn_moe_reference(x, params, TOP_K, matmul_dtype=jnp.bfloat16)
    err_mp = float(jnp.max(jnp.abs(out - ref_mp)))
    assert err_mp < 2e-2, f"mixed-precision-matched max abs err {err_mp}"

    # (2) faithful f32 reference (difference bounded by bf16 weight/act rounding):
    ref_hp = ffn_moe_reference(x, params, TOP_K, matmul_dtype=jnp.float32)
    err_hp = float(jnp.max(jnp.abs(out - ref_hp)))
    assert err_hp < 1.5e-1, f"f32 reference max abs err {err_hp}"

    # TODO(synk): training-mode path (dropout, aux load-balancing loss via
    # AddAuxiliaryLoss) is not implemented; this kernel covers eval forward.
    print("KERNEL_OK")
</pallas_src>

<mosaic_0001>
module attributes {stable_mosaic.version = 11 : i64} {
  func.func @_ffn_moe_fused_kernel(%arg0: i32, %arg1: memref<16x256xbf16, #tpu.memory_space<vmem>>, %arg2: memref<16x8xf32, #tpu.memory_space<vmem>>, %arg3: memref<256x1024xbf16, #tpu.memory_space<vmem>>, %arg4: memref<1x1024xf32, #tpu.memory_space<vmem>>, %arg5: memref<1024x256xbf16, #tpu.memory_space<vmem>>, %arg6: memref<8x256xbf16, #tpu.memory_space<vmem>>, %arg7: memref<256x512xbf16, #tpu.memory_space<vmem>>, %arg8: memref<1x512xf32, #tpu.memory_space<vmem>>, %arg9: memref<512x256xbf16, #tpu.memory_space<vmem>>, %arg10: memref<1x256xf32, #tpu.memory_space<vmem>>, %arg11: memref<16x256xf32, #tpu.memory_space<vmem>>) attributes {dimension_semantics = [#tpu.dimension_semantics<parallel>], iteration_bounds = array<i64: 1>, scalar_prefetch = 0 : i64, scratch_operands = 0 : i64, tpu.core_type = #tpu.core_type<tc>, window_params = [{transform_indices = @transform_0, window_bounds = array<i64: 16, 256>}, {transform_indices = @transform_1, window_bounds = array<i64: 16, 8>}, {pipeline_mode = #tpu.pipeline_mode<synchronous>, transform_indices = @transform_2, window_bounds = array<i64: 256, 1024>}, {pipeline_mode = #tpu.pipeline_mode<synchronous>, transform_indices = @transform_3, window_bounds = array<i64: 1, 1024>}, {pipeline_mode = #tpu.pipeline_mode<synchronous>, transform_indices = @transform_4, window_bounds = array<i64: 1024, 256>}, {pipeline_mode = #tpu.pipeline_mode<synchronous>, transform_indices = @transform_5, window_bounds = array<i64: 8, 256>}, {pipeline_mode = #tpu.pipeline_mode<synchronous>, transform_indices = @transform_6, window_bounds = array<i64: 256, 512>}, {pipeline_mode = #tpu.pipeline_mode<synchronous>, transform_indices = @transform_7, window_bounds = array<i64: 1, 512>}, {pipeline_mode = #tpu.pipeline_mode<synchronous>, transform_indices = @transform_8, window_bounds = array<i64: 512, 256>}, {pipeline_mode = #tpu.pipeline_mode<synchronous>, transform_indices = @transform_9, window_bounds = array<i64: 1, 256>}, {transform_indices = @transform_10, window_bounds = array<i64: 16, 256>}]} {
    %c0 = arith.constant 0 : index
    %c0_0 = arith.constant 0 : index
    %0 = vector.load %arg1[%c0, %c0_0] : memref<16x256xbf16, #tpu.memory_space<vmem>>, vector<16x256xbf16>
    %c0_1 = arith.constant 0 : index
    %c0_2 = arith.constant 0 : index
    %1 = vector.load %arg2[%c0_1, %c0_2] : memref<16x8xf32, #tpu.memory_space<vmem>>, vector<16x8xf32>
    %c0_3 = arith.constant 0 : index
    %c0_4 = arith.constant 0 : index
    %2 = vector.load %arg3[%c0_3, %c0_4] : memref<256x1024xbf16, #tpu.memory_space<vmem>>, vector<256x1024xbf16>
    %cst = arith.constant dense<0.000000e+00> : vector<16x1024xf32>
    %3 = tpu.matmul %0, %2, %cst {dimension_numbers = #tpu.dot_dimension_numbers<[1], [0], [0], [1], [0, 0, 1, 1], [], []>} : vector<16x256xbf16>, vector<256x1024xbf16>, vector<16x1024xf32> -> vector<16x1024xf32>
    %c0_5 = arith.constant 0 : index
    %c0_6 = arith.constant 0 : index
    %4 = vector.load %arg4[%c0_5, %c0_6] : memref<1x1024xf32, #tpu.memory_space<vmem>>, vector<1x1024xf32>
    %5 = vector.broadcast %4 : vector<1x1024xf32> to vector<16x1024xf32>
    %6 = arith.addf %3, %5 : vector<16x1024xf32>
    %cst_7 = arith.constant 0.000000e+00 : f32
    %7 = vector.broadcast %cst_7 : f32 to vector<16x1024xf32>
    %8 = arith.maximumf %6, %7 : vector<16x1024xf32>
    %9 = vector.extract_strided_slice %1 {offsets = [0, 0], sizes = [16, 1], strides = [1, 1]} : vector<16x8xf32> to vector<16x1xf32>
    %10 = vector.extract_strided_slice %8 {offsets = [0, 0], sizes = [16, 128], strides = [1, 1]} : vector<16x1024xf32> to vector<16x128xf32>
    %11 = vector.broadcast %9 : vector<16x1xf32> to vector<16x128xf32>
    %12 = arith.mulf %10, %11 : vector<16x128xf32>
    %13 = arith.truncf %12 : vector<16x128xf32> to vector<16x128xbf16>
    %14 = vector.extract_strided_slice %1 {offsets = [0, 1], sizes = [16, 1], strides = [1, 1]} : vector<16x8xf32> to vector<16x1xf32>
    %15 = vector.extract_strided_slice %8 {offsets = [0, 128], sizes = [16, 128], strides = [1, 1]} : vector<16x1024xf32> to vector<16x128xf32>
    %16 = vector.broadcast %14 : vector<16x1xf32> to vector<16x128xf32>
    %17 = arith.mulf %15, %16 : vector<16x128xf32>
    %18 = arith.truncf %17 : vector<16x128xf32> to vector<16x128xbf16>
    %19 = vector.extract_strided_slice %1 {offsets = [0, 2], sizes = [16, 1], strides = [1, 1]} : vector<16x8xf32> to vector<16x1xf32>
    %20 = vector.extract_strided_slice %8 {offsets = [0, 256], sizes = [16, 128], strides = [1, 1]} : vector<16x1024xf32> to vector<16x128xf32>
    %21 = vector.broadcast %19 : vector<16x1xf32> to vector<16x128xf32>
    %22 = arith.mulf %20, %21 : vector<16x128xf32>
    %23 = arith.truncf %22 : vector<16x128xf32> to vector<16x128xbf16>
    %24 = vector.extract_strided_slice %1 {offsets = [0, 3], sizes = [16, 1], strides = [1, 1]} : vector<16x8xf32> to vector<16x1xf32>
    %25 = vector.extract_strided_slice %8 {offsets = [0, 384], sizes = [16, 128], strides = [1, 1]} : vector<16x1024xf32> to vector<16x128xf32>
    %26 = vector.broadcast %24 : vector<16x1xf32> to vector<16x128xf32>
    %27 = arith.mulf %25, %26 : vector<16x128xf32>
    %28 = arith.truncf %27 : vector<16x128xf32> to vector<16x128xbf16>
    %29 = vector.extract_strided_slice %1 {offsets = [0, 4], sizes = [16, 1], strides = [1, 1]} : vector<16x8xf32> to vector<16x1xf32>
    %30 = vector.extract_strided_slice %8 {offsets = [0, 512], sizes = [16, 128], strides = [1, 1]} : vector<16x1024xf32> to vector<16x128xf32>
    %31 = vector.broadcast %29 : vector<16x1xf32> to vector<16x128xf32>
    %32 = arith.mulf %30, %31 : vector<16x128xf32>
    %33 = arith.truncf %32 : vector<16x128xf32> to vector<16x128xbf16>
    %34 = vector.extract_strided_slice %1 {offsets = [0, 5], sizes = [16, 1], strides = [1, 1]} : vector<16x8xf32> to vector<16x1xf32>
    %35 = vector.extract_strided_slice %8 {offsets = [0, 640], sizes = [16, 128], strides = [1, 1]} : vector<16x1024xf32> to vector<16x128xf32>
    %36 = vector.broadcast %34 : vector<16x1xf32> to vector<16x128xf32>
    %37 = arith.mulf %35, %36 : vector<16x128xf32>
    %38 = arith.truncf %37 : vector<16x128xf32> to vector<16x128xbf16>
    %39 = vector.extract_strided_slice %1 {offsets = [0, 6], sizes = [16, 1], strides = [1, 1]} : vector<16x8xf32> to vector<16x1xf32>
    %40 = vector.extract_strided_slice %8 {offsets = [0, 768], sizes = [16, 128], strides = [1, 1]} : vector<16x1024xf32> to vector<16x128xf32>
    %41 = vector.broadcast %39 : vector<16x1xf32> to vector<16x128xf32>
    %42 = arith.mulf %40, %41 : vector<16x128xf32>
    %43 = arith.truncf %42 : vector<16x128xf32> to vector<16x128xbf16>
    %44 = vector.extract_strided_slice %1 {offsets = [0, 7], sizes = [16, 1], strides = [1, 1]} : vector<16x8xf32> to vector<16x1xf32>
    %45 = vector.extract_strided_slice %8 {offsets = [0, 896], sizes = [16, 128], strides = [1, 1]} : vector<16x1024xf32> to vector<16x128xf32>
    %46 = vector.broadcast %44 : vector<16x1xf32> to vector<16x128xf32>
    %47 = arith.mulf %45, %46 : vector<16x128xf32>
    %48 = arith.truncf %47 : vector<16x128xf32> to vector<16x128xbf16>
    %49 = tpu.concatenate %13, %18, %23, %28, %33, %38, %43, %48 in 1 : vector<16x128xbf16>, vector<16x128xbf16>, vector<16x128xbf16>, vector<16x128xbf16>, vector<16x128xbf16>, vector<16x128xbf16>, vector<16x128xbf16>, vector<16x128xbf16> -> vector<16x1024xbf16>
    %c0_8 = arith.constant 0 : index
    %c0_9 = arith.constant 0 : index
    %50 = vector.load %arg5[%c0_8, %c0_9] : memref<1024x256xbf16, #tpu.memory_space<vmem>>, vector<1024x256xbf16>
    %cst_10 = arith.constant dense<0.000000e+00> : vector<16x256xf32>
    %51 = tpu.matmul %49, %50, %cst_10 {dimension_numbers = #tpu.dot_dimension_numbers<[1], [0], [0], [1], [0, 0, 1, 1], [], []>} : vector<16x1024xbf16>, vector<1024x256xbf16>, vector<16x256xf32> -> vector<16x256xf32>
    %52 = arith.truncf %1 : vector<16x8xf32> to vector<16x8xbf16>
    %c0_11 = arith.constant 0 : index
    %c0_12 = arith.constant 0 : index
    %53 = vector.load %arg6[%c0_11, %c0_12] : memref<8x256xbf16, #tpu.memory_space<vmem>>, vector<8x256xbf16>
    %cst_13 = arith.constant dense<0.000000e+00> : vector<16x256xf32>
    %54 = tpu.matmul %52, %53, %cst_13 {dimension_numbers = #tpu.dot_dimension_numbers<[1], [0], [0], [1], [0, 0, 1, 1], [], []>} : vector<16x8xbf16>, vector<8x256xbf16>, vector<16x256xf32> -> vector<16x256xf32>
    %55 = arith.addf %51, %54 : vector<16x256xf32>
    %c0_14 = arith.constant 0 : index
    %c0_15 = arith.constant 0 : index
    %56 = vector.load %arg7[%c0_14, %c0_15] : memref<256x512xbf16, #tpu.memory_space<vmem>>, vector<256x512xbf16>
    %cst_16 = arith.constant dense<0.000000e+00> : vector<16x512xf32>
    %57 = tpu.matmul %0, %56, %cst_16 {dimension_numbers = #tpu.dot_dimension_numbers<[1], [0], [0], [1], [0, 0, 1, 1], [], []>} : vector<16x256xbf16>, vector<256x512xbf16>, vector<16x512xf32> -> vector<16x512xf32>
    %c0_17 = arith.constant 0 : index
    %c0_18 = arith.constant 0 : index
    %58 = vector.load %arg8[%c0_17, %c0_18] : memref<1x512xf32, #tpu.memory_space<vmem>>, vector<1x512xf32>
    %59 = vector.broadcast %58 : vector<1x512xf32> to vector<16x512xf32>
    %60 = arith.addf %57, %59 : vector<16x512xf32>
    %cst_19 = arith.constant 0.000000e+00 : f32
    %61 = vector.broadcast %cst_19 : f32 to vector<16x512xf32>
    %62 = arith.maximumf %60, %61 : vector<16x512xf32>
    %63 = arith.truncf %62 : vector<16x512xf32> to vector<16x512xbf16>
    %c0_20 = arith.constant 0 : index
    %c0_21 = arith.constant 0 : index
    %64 = vector.load %arg9[%c0_20, %c0_21] : memref<512x256xbf16, #tpu.memory_space<vmem>>, vector<512x256xbf16>
    %cst_22 = arith.constant dense<0.000000e+00> : vector<16x256xf32>
    %65 = tpu.matmul %63, %64, %cst_22 {dimension_numbers = #tpu.dot_dimension_numbers<[1], [0], [0], [1], [0, 0, 1, 1], [], []>} : vector<16x512xbf16>, vector<512x256xbf16>, vector<16x256xf32> -> vector<16x256xf32>
    %66 = arith.addf %55, %65 : vector<16x256xf32>
    %c0_23 = arith.constant 0 : index
    %c0_24 = arith.constant 0 : index
    %67 = vector.load %arg10[%c0_23, %c0_24] : memref<1x256xf32, #tpu.memory_space<vmem>>, vector<1x256xf32>
    %68 = vector.broadcast %67 : vector<1x256xf32> to vector<16x256xf32>
    %69 = arith.addf %66, %68 : vector<16x256xf32>
    %c0_25 = arith.constant 0 : index
    %c0_26 = arith.constant 0 : index
    %70 = vector.load %arg11[%c0_25, %c0_26] : memref<16x256xf32, #tpu.memory_space<vmem>>, vector<16x256xf32>
    tpu.vector_store %arg11[%c0_25, %c0_26], %69 {strides = array<i32>} : memref<16x256xf32, #tpu.memory_space<vmem>>, vector<16x256xf32>,
    return
  }
  func.func @transform_0(%arg0: i32) -> (i32, i32) {
    %c0_i32 = arith.constant 0 : i32
    %c0_i32_0 = arith.constant 0 : i32
    return %arg0, %c0_i32 : i32, i32
  }
  func.func @transform_1(%arg0: i32) -> (i32, i32) {
    %c0_i32 = arith.constant 0 : i32
    %c0_i32_0 = arith.constant 0 : i32
    return %arg0, %c0_i32 : i32, i32
  }
  func.func @transform_2(%arg0: i32) -> (i32, i32) {
    %c0_i32 = arith.constant 0 : i32
    %c0_i32_0 = arith.constant 0 : i32
    %c0_i32_1 = arith.constant 0 : i32
    return %c0_i32, %c0_i32_0 : i32, i32
  }
  func.func @transform_3(%arg0: i32) -> (i32, i32) {
    %c0_i32 = arith.constant 0 : i32
    %c0_i32_0 = arith.constant 0 : i32
    %c0_i32_1 = arith.constant 0 : i32
    return %c0_i32, %c0_i32_0 : i32, i32
  }
  func.func @transform_4(%arg0: i32) -> (i32, i32) {
    %c0_i32 = arith.constant 0 : i32
    %c0_i32_0 = arith.constant 0 : i32
    %c0_i32_1 = arith.constant 0 : i32
    return %c0_i32, %c0_i32_0 : i32, i32
  }
  func.func @transform_5(%arg0: i32) -> (i32, i32) {
    %c0_i32 = arith.constant 0 : i32
    %c0_i32_0 = arith.constant 0 : i32
    %c0_i32_1 = arith.constant 0 : i32
    return %c0_i32, %c0_i32_0 : i32, i32
  }
  func.func @transform_6(%arg0: i32) -> (i32, i32) {
    %c0_i32 = arith.constant 0 : i32
    %c0_i32_0 = arith.constant 0 : i32
    %c0_i32_1 = arith.constant 0 : i32
    return %c0_i32, %c0_i32_0 : i32, i32
  }
  func.func @transform_7(%arg0: i32) -> (i32, i32) {
    %c0_i32 = arith.constant 0 : i32
    %c0_i32_0 = arith.constant 0 : i32
    %c0_i32_1 = arith.constant 0 : i32
    return %c0_i32, %c0_i32_0 : i32, i32
  }
  func.func @transform_8(%arg0: i32) -> (i32, i32) {
    %c0_i32 = arith.constant 0 : i32
    %c0_i32_0 = arith.constant 0 : i32
    %c0_i32_1 = arith.constant 0 : i32
    return %c0_i32, %c0_i32_0 : i32, i32
  }
  func.func @transform_9(%arg0: i32) -> (i32, i32) {
    %c0_i32 = arith.constant 0 : i32
    %c0_i32_0 = arith.constant 0 : i32
    %c0_i32_1 = arith.constant 0 : i32
    return %c0_i32, %c0_i32_0 : i32, i32
  }
  func.func @transform_10(%arg0: i32) -> (i32, i32) {
    %c0_i32 = arith.constant 0 : i32
    %c0_i32_0 = arith.constant 0 : i32
    return %arg0, %c0_i32 : i32, i32
  }
}

</mosaic_0001>

<llo_original>
// kernel: ffn_moe_forward.1
$region0: #{ffn_moe_forward.1}
  #allocation0 [shape = 'u32[]', space=smem, size = 0x4, offset = 0x4, fixed_abs, tag = 'smem constant byte address 0x4 - core index']
  #allocation1 [shape = 'u32[144,128]{1,0:T(1,128)}', space=vmem, size = 0x12000, scoped, tag = 'internal scratch']
  %s0 = inlined_call_operand.vmem [shape: bf16[16,256], index: 0, kind: input, shape index: {}]
  %s1 = inlined_call_operand.vmem [shape: f32[16,8], index: 1, kind: input, shape index: {}]
  %s2 = inlined_call_operand.hbm [shape: bf16[256,1024], index: 2, kind: input, shape index: {}]
  %s3 = inlined_call_operand.vmem [shape: f32[1,1024], index: 3, kind: input, shape index: {}]
  %s4 = inlined_call_operand.hbm [shape: bf16[1024,256], index: 4, kind: input, shape index: {}]
  %s5 = inlined_call_operand.vmem [shape: bf16[8,256], index: 5, kind: input, shape index: {}]
  %s6 = inlined_call_operand.hbm [shape: bf16[256,512], index: 6, kind: input, shape index: {}]
  %s7 = inlined_call_operand.vmem [shape: f32[1,512], index: 7, kind: input, shape index: {}]
  %s8 = inlined_call_operand.hbm [shape: bf16[512,256], index: 8, kind: input, shape index: {}]
  %s9 = inlined_call_operand.vmem [shape: f32[1,256], index: 9, kind: input, shape index: {}]
  %s10 = inlined_call_operand.hbm [shape: f32[16,256], index: 10, kind: output, shape index: {}]
  %s11 = sld [smem:[#allocation0]]
  $region66: #{ffn_moe_forward.1} parent=0
    _
  %s13 = ssub.s32 1, %s11
  %s14 = scalar_select 0, %s13, %s11
  $region1: #{ffn_moe_forward.1} parent=0
    #allocation2 [shape = 'u8[524288]{0}', space=vmem, size = 0x80000, scoped, tag = 'input window, operand 2, single buffered']
    #allocation3 [shape = 's32[1]{0}', space=sflag, size = 0x4, scoped, tag = 'scoped memory for ffn_moe_forward.1']
    #allocation4 [shape = 's32[1]{0}', space=sflag, size = 0x4, scoped, tag = 'scoped memory for ffn_moe_forward.1']
    #allocation5 [shape = 'u8[524288]{0}', space=vmem, size = 0x80000, scoped, tag = 'input window, operand 4, single buffered']
    #allocation6 [shape = 's32[1]{0}', space=sflag, size = 0x4, scoped, tag = 'scoped memory for ffn_moe_forward.1']
    #allocation7 [shape = 'u8[262144]{0}', space=vmem, size = 0x40000, scoped, tag = 'input window, operand 6, single buffered']
    #allocation8 [shape = 'u8[262144]{0}', space=vmem, size = 0x40000, scoped, tag = 'input window, operand 8, single buffered']
    #allocation9 [shape = 's32[1]{0}', space=sflag, size = 0x4, scoped, tag = 'scoped memory for ffn_moe_forward.1']
    #allocation10 [shape = 'u8[16384]{0}', space=vmem, size = 0x4000, scoped, tag = 'output window, operand 0, single buffered']
    %15 = vsyncpa [#allocation3], 0
    %16 = vsyncpa [#allocation6], 0
    %17 = vsyncpa [#allocation9], 0
    %18 = vsyncpa [#allocation4], 0
    // Predicated region
    $region2: #{ffn_moe_forward.1} parent=1 // pred_check
      _
    $region3: #{ffn_moe_forward.1} parent=1 // pred_check_branch
      %20 = sbr.rel (0) target = $region5
    $region4: #{ffn_moe_forward.1} parent=1 // pred_region
      _
    $region5: #{ffn_moe_forward.1} parent=1 // pred_fallthru
      _
    // Predicated region
    $region6: #{ffn_moe_forward.1} parent=1 // pred_check
      _
    $region7: #{ffn_moe_forward.1} parent=1 // pred_check_branch
      %22 = sbr.rel (0) target = $region9
    $region8: #{ffn_moe_forward.1} parent=1 // pred_region
      _
    $region9: #{ffn_moe_forward.1} parent=1 // pred_fallthru
      _
    // Predicated region
    $region10: #{ffn_moe_forward.1} parent=1 // pred_check
      _
    $region11: #{ffn_moe_forward.1} parent=1 // pred_check_branch
      %24 = sbr.rel (0) target = $region13
    $region12: #{ffn_moe_forward.1} parent=1 // pred_region
      %s26 = ssub.s32 16384, 16384
      %27 = vsyncadd [#allocation3], %s26
      %s28 = sshll.u32 [#allocation2], 4
      %s29 = int_to_ptr.vmem [resolvable:$true] %s28
      %34 = dma.hbm_to_vmem [thread:$0]  %s2, 16384, %s29, [#allocation3], 512, 512, 32
    $region13: #{ffn_moe_forward.1} parent=1 // pred_fallthru
      _
    // Predicated region
    $region14: #{ffn_moe_forward.1} parent=1 // pred_check
      _
    $region15: #{ffn_moe_forward.1} parent=1 // pred_check_branch
      %36 = sbr.rel (0) target = $region17
    $region16: #{ffn_moe_forward.1} parent=1 // pred_region
      _
    $region17: #{ffn_moe_forward.1} parent=1 // pred_fallthru
      _
    // Predicated region
    $region18: #{ffn_moe_forward.1} parent=1 // pred_check
      _
    $region19: #{ffn_moe_forward.1} parent=1 // pred_check_branch
      %38 = sbr.rel (0) target = $region21
    $region20: #{ffn_moe_forward.1} parent=1 // pred_region
      %s40 = ssub.s32 16384, 16384
      %41 = vsyncadd [#allocation6], %s40
      %s42 = sshll.u32 [#allocation5], 4
      %s43 = int_to_ptr.vmem [resolvable:$true] %s42
      %48 = dma.hbm_to_vmem [thread:$0]  %s4, 16384, %s43, [#allocation6], 128, 128, 8
    $region21: #{ffn_moe_forward.1} parent=1 // pred_fallthru
      _
    // Predicated region
    $region22: #{ffn_moe_forward.1} parent=1 // pred_check
      _
    $region23: #{ffn_moe_forward.1} parent=1 // pred_check_branch
      %50 = sbr.rel (0) target = $region25
    $region24: #{ffn_moe_forward.1} parent=1 // pred_region
      _
    $region25: #{ffn_moe_forward.1} parent=1 // pred_fallthru
      _
    // Predicated region
    $region26: #{ffn_moe_forward.1} parent=1 // pred_check
      _
    $region27: #{ffn_moe_forward.1} parent=1 // pred_check_branch
      %52 = sbr.rel (0) target = $region29
    $region28: #{ffn_moe_forward.1} parent=1 // pred_region
      %s54 = ssub.s32 8192, 8192
      %55 = vsyncadd [#allocation6], %s54
      %s56 = sshll.u32 [#allocation7], 4
      %s57 = int_to_ptr.vmem [resolvable:$true] %s56
      %62 = dma.hbm_to_vmem [thread:$0]  %s6, 8192, %s57, [#allocation6], 256, 256, 16
    $region29: #{ffn_moe_forward.1} parent=1 // pred_fallthru
      _
    // Predicated region
    $region30: #{ffn_moe_forward.1} parent=1 // pred_check
      _
    $region31: #{ffn_moe_forward.1} parent=1 // pred_check_branch
      %64 = sbr.rel (0) target = $region33
    $region32: #{ffn_moe_forward.1} parent=1 // pred_region
      _
    $region33: #{ffn_moe_forward.1} parent=1 // pred_fallthru
      _
    // Predicated region
    $region34: #{ffn_moe_forward.1} parent=1 // pred_check
      _
    $region35: #{ffn_moe_forward.1} parent=1 // pred_check_branch
      %66 = sbr.rel (0) target = $region37
    $region36: #{ffn_moe_forward.1} parent=1 // pred_region
      %s68 = ssub.s32 8192, 8192
      %69 = vsyncadd [#allocation9], %s68
      %s70 = sshll.u32 [#allocation8], 4
      %s71 = int_to_ptr.vmem [resolvable:$true] %s70
      %76 = dma.hbm_to_vmem [thread:$0]  %s8, 8192, %s71, [#allocation9], 128, 128, 8
    $region37: #{ffn_moe_forward.1} parent=1 // pred_fallthru
      _
    // Predicated region
    $region38: #{ffn_moe_forward.1} parent=1 // pred_check
      _
    $region39: #{ffn_moe_forward.1} parent=1 // pred_check_branch
      %78 = sbr.rel (0) target = $region41
    $region40: #{ffn_moe_forward.1} parent=1 // pred_region
      _
    $region41: #{ffn_moe_forward.1} parent=1 // pred_fallthru
      _
    // Predicated region
    $region42: #{ffn_moe_forward.1} parent=1 // pred_check
      _
    $region43: #{ffn_moe_forward.1} parent=1 // pred_check_branch
      %80 = sbr.rel (0) target = $region45
    $region44: #{ffn_moe_forward.1} parent=1 // pred_region
      %81 = dma.done [#allocation3], 16384
    $region45: #{ffn_moe_forward.1} parent=1 // pred_fallthru
      _
    // Predicated region
    $region46: #{ffn_moe_forward.1} parent=1 // pred_check
      _
    $region47: #{ffn_moe_forward.1} parent=1 // pred_check_branch
      %83 = sbr.rel (0) target = $region49
    $region48: #{ffn_moe_forward.1} parent=1 // pred_region
      %84 = dma.done [#allocation6], 16384
    $region49: #{ffn_moe_forward.1} parent=1 // pred_fallthru
      _
    // Predicated region
    $region50: #{ffn_moe_forward.1} parent=1 // pred_check
      _
    $region51: #{ffn_moe_forward.1} parent=1 // pred_check_branch
      %86 = sbr.rel (0) target = $region53
    $region52: #{ffn_moe_forward.1} parent=1 // pred_region
      %87 = dma.done [#allocation6], 8192
    $region53: #{ffn_moe_forward.1} parent=1 // pred_fallthru
      _
    // Predicated region
    $region54: #{ffn_moe_forward.1} parent=1 // pred_check
      _
    $region55: #{ffn_moe_forward.1} parent=1 // pred_check_branch
      %89 = sbr.rel (0) target = $region57
    $region56: #{ffn_moe_forward.1} parent=1 // pred_region
      %90 = dma.done [#allocation9], 8192
    $region57: #{ffn_moe_forward.1} parent=1 // pred_fallthru
      _
    %v92 = vld [vmem:[%s0] sm:$0xff]
    %v93 = vld [vmem:[%s0 + $0x8] sm:$0xff]
    %v94 = vld [vmem:[%s1] sm:$0xff]
    %v95 = vld [vmem:[%s1 + $0x8] sm:$0xff]
    %v96 = vld [vmem:[#allocation2] sm:$0xff]
    %v97 = vld [vmem:[#allocation2 + $0x8] sm:$0xff]
    %v98 = vld [vmem:[#allocation2 + $0x10] sm:$0xff]
    %v99 = vld [vmem:[#allocation2 + $0x18] sm:$0xff]
    %v100 = vld [vmem:[#allocation2 + $0x20] sm:$0xff]
    %v101 = vld [vmem:[#allocation2 + $0x28] sm:$0xff]
    %v102 = vld [vmem:[#allocation2 + $0x30] sm:$0xff]
    %v103 = vld [vmem:[#allocation2 + $0x38] sm:$0xff]
    %v104 = vld [vmem:[#allocation2 + $0x40] sm:$0xff]
    %v105 = vld [vmem:[#allocation2 + $0x48] sm:$0xff]
    %v106 = vld [vmem:[#allocation2 + $0x50] sm:$0xff]
    %v107 = vld [vmem:[#allocation2 + $0x58] sm:$0xff]
    %v108 = vld [vmem:[#allocation2 + $0x60] sm:$0xff]
    %v109 = vld [vmem:[#allocation2 + $0x68] sm:$0xff]
    %v110 = vld [vmem:[#allocation2 + $0x70] sm:$0xff]
    %v111 = vld [vmem:[#allocation2 + $0x78] sm:$0xff]
    %v112 = vld [vmem:[#allocation2 + $0x80] sm:$0xff]
    %v113 = vld [vmem:[#allocation2 + $0x88] sm:$0xff]
    %v114 = vld [vmem:[#allocation2 + $0x90] sm:$0xff]
    %v115 = vld [vmem:[#allocation2 + $0x98] sm:$0xff]
    %v116 = vld [vmem:[#allocation2 + $0xa0] sm:$0xff]
    %v117 = vld [vmem:[#allocation2 + $0xa8] sm:$0xff]
    %v118 = vld [vmem:[#allocation2 + $0xb0] sm:$0xff]
    %v119 = vld [vmem:[#allocation2 + $0xb8] sm:$0xff]
    %v120 = vld [vmem:[#allocation2 + $0xc0] sm:$0xff]
    %v121 = vld [vmem:[#allocation2 + $0xc8] sm:$0xff]
    %v122 = vld [vmem:[#allocation2 + $0xd0] sm:$0xff]
    %v123 = vld [vmem:[#allocation2 + $0xd8] sm:$0xff]
    %v124 = vld [vmem:[#allocation2 + $0xe0] sm:$0xff]
    %v125 = vld [vmem:[#allocation2 + $0xe8] sm:$0xff]
    %v126 = vld [vmem:[#allocation2 + $0xf0] sm:$0xff]
    %v127 = vld [vmem:[#allocation2 + $0xf8] sm:$0xff]
    %v128 = vld [vmem:[#allocation2 + $0x100] sm:$0xff]
    %v129 = vld [vmem:[#allocation2 + $0x108] sm:$0xff]
    %v130 = vld [vmem:[#allocation2 + $0x110] sm:$0xff]
    %v131 = vld [vmem:[#allocation2 + $0x118] sm:$0xff]
    %v132 = vld [vmem:[#allocation2 + $0x120] sm:$0xff]
    %v133 = vld [vmem:[#allocation2 + $0x128] sm:$0xff]
    %v134 = vld [vmem:[#allocation2 + $0x130] sm:$0xff]
    %v135 = vld [vmem:[#allocation2 + $0x138] sm:$0xff]
    %v136 = vld [vmem:[#allocation2 + $0x140] sm:$0xff]
    %v137 = vld [vmem:[#allocation2 + $0x148] sm:$0xff]
    %v138 = vld [vmem:[#allocation2 + $0x150] sm:$0xff]
    %v139 = vld [vmem:[#allocation2 + $0x158] sm:$0xff]
    %v140 = vld [vmem:[#allocation2 + $0x160] sm:$0xff]
    %v141 = vld [vmem:[#allocation2 + $0x168] sm:$0xff]
    %v142 = vld [vmem:[#allocation2 + $0x170] sm:$0xff]
    %v143 = vld [vmem:[#allocation2 + $0x178] sm:$0xff]
    %v144 = vld [vmem:[#allocation2 + $0x180] sm:$0xff]
    %v145 = vld [vmem:[#allocation2 + $0x188] sm:$0xff]
    %v146 = vld [vmem:[#allocation2 + $0x190] sm:$0xff]
    %v147 = vld [vmem:[#allocation2 + $0x198] sm:$0xff]
    %v148 = vld [vmem:[#allocation2 + $0x1a0] sm:$0xff]
    %v149 = vld [vmem:[#allocation2 + $0x1a8] sm:$0xff]
    %v150 = vld [vmem:[#allocation2 + $0x1b0] sm:$0xff]
    %v151 = vld [vmem:[#allocation2 + $0x1b8] sm:$0xff]
    %v152 = vld [vmem:[#allocation2 + $0x1c0] sm:$0xff]
    %v153 = vld [vmem:[#allocation2 + $0x1c8] sm:$0xff]
    %v154 = vld [vmem:[#allocation2 + $0x1d0] sm:$0xff]
    %v155 = vld [vmem:[#allocation2 + $0x1d8] sm:$0xff]
    %v156 = vld [vmem:[#allocation2 + $0x1e0] sm:$0xff]
    %v157 = vld [vmem:[#allocation2 + $0x1e8] sm:$0xff]
    %v158 = vld [vmem:[#allocation2 + $0x1f0] sm:$0xff]
    %v159 = vld [vmem:[#allocation2 + $0x1f8] sm:$0xff]
    %v160 = vld [vmem:[#allocation2 + $0x200] sm:$0xff]
    %v161 = vld [vmem:[#allocation2 + $0x208] sm:$0xff]
    %v162 = vld [vmem:[#allocation2 + $0x210] sm:$0xff]
    %v163 = vld [vmem:[#allocation2 + $0x218] sm:$0xff]
    %v164 = vld [vmem:[#allocation2 + $0x220] sm:$0xff]
    %v165 = vld [vmem:[#allocation2 + $0x228] sm:$0xff]
    %v166 = vld [vmem:[#allocation2 + $0x230] sm:$0xff]
    %v167 = vld [vmem:[#allocation2 + $0x238] sm:$0xff]
    %v168 = vld [vmem:[#allocation2 + $0x240] sm:$0xff]
    %v169 = vld [vmem:[#allocation2 + $0x248] sm:$0xff]
    %v170 = vld [vmem:[#allocation2 + $0x250] sm:$0xff]
    %v171 = vld [vmem:[#allocation2 + $0x258] sm:$0xff]
    %v172 = vld [vmem:[#allocation2 + $0x260] sm:$0xff]
    %v173 = vld [vmem:[#allocation2 + $0x268] sm:$0xff]
    %v174 = vld [vmem:[#allocation2 + $0x270] sm:$0xff]
    %v175 = vld [vmem:[#allocation2 + $0x278] sm:$0xff]
    %v176 = vld [vmem:[#allocation2 + $0x280] sm:$0xff]
    %v177 = vld [vmem:[#allocation2 + $0x288] sm:$0xff]
    %v178 = vld [vmem:[#allocation2 + $0x290] sm:$0xff]
    %v179 = vld [vmem:[#allocation2 + $0x298] sm:$0xff]
    %v180 = vld [vmem:[#allocation2 + $0x2a0] sm:$0xff]
    %v181 = vld [vmem:[#allocation2 + $0x2a8] sm:$0xff]
    %v182 = vld [vmem:[#allocation2 + $0x2b0] sm:$0xff]
    %v183 = vld [vmem:[#allocation2 + $0x2b8] sm:$0xff]
    %v184 = vld [vmem:[#allocation2 + $0x2c0] sm:$0xff]
    %v185 = vld [vmem:[#allocation2 + $0x2c8] sm:$0xff]
    %v186 = vld [vmem:[#allocation2 + $0x2d0] sm:$0xff]
    %v187 = vld [vmem:[#allocation2 + $0x2d8] sm:$0xff]
    %v188 = vld [vmem:[#allocation2 + $0x2e0] sm:$0xff]
    %v189 = vld [vmem:[#allocation2 + $0x2e8] sm:$0xff]
    %v190 = vld [vmem:[#allocation2 + $0x2f0] sm:$0xff]
    %v191 = vld [vmem:[#allocation2 + $0x2f8] sm:$0xff]
    %v192 = vld [vmem:[#allocation2 + $0x300] sm:$0xff]
    %v193 = vld [vmem:[#allocation2 + $0x308] sm:$0xff]
    %v194 = vld [vmem:[#allocation2 + $0x310] sm:$0xff]
    %v195 = vld [vmem:[#allocation2 + $0x318] sm:$0xff]
    %v196 = vld [vmem:[#allocation2 + $0x320] sm:$0xff]
    %v197 = vld [vmem:[#allocation2 + $0x328] sm:$0xff]
    %v198 = vld [vmem:[#allocation2 + $0x330] sm:$0xff]
    %v199 = vld [vmem:[#allocation2 + $0x338] sm:$0xff]
    %v200 = vld [vmem:[#allocation2 + $0x340] sm:$0xff]
    %v201 = vld [vmem:[#allocation2 + $0x348] sm:$0xff]
    %v202 = vld [vmem:[#allocation2 + $0x350] sm:$0xff]
    %v203 = vld [vmem:[#allocation2 + $0x358] sm:$0xff]
    %v204 = vld [vmem:[#allocation2 + $0x360] sm:$0xff]
    %v205 = vld [vmem:[#allocation2 + $0x368] sm:$0xff]
    %v206 = vld [vmem:[#allocation2 + $0x370] sm:$0xff]
    %v207 = vld [vmem:[#allocation2 + $0x378] sm:$0xff]
    %v208 = vld [vmem:[#allocation2 + $0x380] sm:$0xff]
    %v209 = vld [vmem:[#allocation2 + $0x388] sm:$0xff]
    %v210 = vld [vmem:[#allocation2 + $0x390] sm:$0xff]
    %v211 = vld [vmem:[#allocation2 + $0x398] sm:$0xff]
    %v212 = vld [vmem:[#allocation2 + $0x3a0] sm:$0xff]
    %v213 = vld [vmem:[#allocation2 + $0x3a8] sm:$0xff]
    %v214 = vld [vmem:[#allocation2 + $0x3b0] sm:$0xff]
    %v215 = vld [vmem:[#allocation2 + $0x3b8] sm:$0xff]
    %v216 = vld [vmem:[#allocation2 + $0x3c0] sm:$0xff]
    %v217 = vld [vmem:[#allocation2 + $0x3c8] sm:$0xff]
    %v218 = vld [vmem:[#allocation2 + $0x3d0] sm:$0xff]
    %v219 = vld [vmem:[#allocation2 + $0x3d8] sm:$0xff]
    %v220 = vld [vmem:[#allocation2 + $0x3e0] sm:$0xff]
    %v221 = vld [vmem:[#allocation2 + $0x3e8] sm:$0xff]
    %v222 = vld [vmem:[#allocation2 + $0x3f0] sm:$0xff]
    %v223 = vld [vmem:[#allocation2 + $0x3f8] sm:$0xff]
    %v224 = vld [vmem:[%s3] sm:$0xff]
    %v226 = vlaneseq
    %v227 = vshrl.u32 %v226, 7
    %v228 = vsub.s32 0, %v227
    %v229 = vrot.slane %v224, %v228
    %v230 = vlaneseq
    %v231 = vshrl.u32 %v230, 7
    %v232 = vsub.s32 1, %v231
    %v233 = vrot.slane %v224, %v232
    %v234 = vlaneseq
    %v235 = vshrl.u32 %v234, 7
    %v236 = vsub.s32 2, %v235
    %v237 = vrot.slane %v224, %v236
    %v238 = vlaneseq
    %v239 = vshrl.u32 %v238, 7
    %v240 = vsub.s32 3, %v239
    %v241 = vrot.slane %v224, %v240
    %v242 = vlaneseq
    %v243 = vshrl.u32 %v242, 7
    %v244 = vsub.s32 4, %v243
    %v245 = vrot.slane %v224, %v244
    %v246 = vlaneseq
    %v247 = vshrl.u32 %v246, 7
    %v248 = vsub.s32 5, %v247
    %v249 = vrot.slane %v224, %v248
    %v250 = vlaneseq
    %v251 = vshrl.u32 %v250, 7
    %v252 = vsub.s32 6, %v251
    %v253 = vrot.slane %v224, %v252
    %v254 = vlaneseq
    %v255 = vshrl.u32 %v254, 7
    %v256 = vsub.s32 7, %v255
    %v257 = vrot.slane %v224, %v256
    %v268 = vunpack.c.l.b16 %v92
    %v269 = vunpack.c.h.b16 %v92
    %v270 = vunpack.c.l.b16 %v93
    %v271 = vunpack.c.h.b16 %v93
    %v272 = vpack.c.b16 %v270, %v268
    %v273 = vpack.c.b16 %v271, %v269
    %v404 = vunpack.c.l.b16 %v96
    %v405 = vunpack.c.h.b16 %v96
    %v406 = vunpack.c.l.b16 %v97
    %v407 = vunpack.c.h.b16 %v97
    %v408 = vunpack.c.l.b16 %v98
    %v409 = vunpack.c.h.b16 %v98
    %v410 = vunpack.c.l.b16 %v99
    %v411 = vunpack.c.h.b16 %v99
    %v412 = vunpack.c.l.b16 %v100
    %v413 = vunpack.c.h.b16 %v100
    %v414 = vunpack.c.l.b16 %v101
    %v415 = vunpack.c.h.b16 %v101
    %v416 = vunpack.c.l.b16 %v102
    %v417 = vunpack.c.h.b16 %v102
    %v418 = vunpack.c.l.b16 %v103
    %v419 = vunpack.c.h.b16 %v103
    %v420 = vunpack.c.l.b16 %v104
    %v421 = vunpack.c.h.b16 %v104
    %v422 = vunpack.c.l.b16 %v105
    %v423 = vunpack.c.h.b16 %v105
    %v424 = vunpack.c.l.b16 %v106
    %v425 = vunpack.c.h.b16 %v106
    %v426 = vunpack.c.l.b16 %v107
    %v427 = vunpack.c.h.b16 %v107
    %v428 = vunpack.c.l.b16 %v108
    %v429 = vunpack.c.h.b16 %v108
    %v430 = vunpack.c.l.b16 %v109
    %v431 = vunpack.c.h.b16 %v109
    %v432 = vunpack.c.l.b16 %v110
    %v433 = vunpack.c.h.b16 %v110
    %v434 = vunpack.c.l.b16 %v111
    %v435 = vunpack.c.h.b16 %v111
    %v436 = vunpack.c.l.b16 %v112
    %v437 = vunpack.c.h.b16 %v112
    %v438 = vunpack.c.l.b16 %v113
    %v439 = vunpack.c.h.b16 %v113
    %v440 = vunpack.c.l.b16 %v114
    %v441 = vunpack.c.h.b16 %v114
    %v442 = vunpack.c.l.b16 %v115
    %v443 = vunpack.c.h.b16 %v115
    %v444 = vunpack.c.l.b16 %v116
    %v445 = vunpack.c.h.b16 %v116
    %v446 = vunpack.c.l.b16 %v117
    %v447 = vunpack.c.h.b16 %v117
    %v448 = vunpack.c.l.b16 %v118
    %v449 = vunpack.c.h.b16 %v118
    %v450 = vunpack.c.l.b16 %v119
    %v451 = vunpack.c.h.b16 %v119
    %v452 = vunpack.c.l.b16 %v120
    %v453 = vunpack.c.h.b16 %v120
    %v454 = vunpack.c.l.b16 %v121
    %v455 = vunpack.c.h.b16 %v121
    %v456 = vunpack.c.l.b16 %v122
    %v457 = vunpack.c.h.b16 %v122
    %v458 = vunpack.c.l.b16 %v123
    %v459 = vunpack.c.h.b16 %v123
    %v460 = vunpack.c.l.b16 %v124
    %v461 = vunpack.c.h.b16 %v124
    %v462 = vunpack.c.l.b16 %v125
    %v463 = vunpack.c.h.b16 %v125
    %v464 = vunpack.c.l.b16 %v126
    %v465 = vunpack.c.h.b16 %v126
    %v466 = vunpack.c.l.b16 %v127
    %v467 = vunpack.c.h.b16 %v127
    %v468 = vunpack.c.l.b16 %v128
    %v469 = vunpack.c.h.b16 %v128
    %v470 = vunpack.c.l.b16 %v129
    %v471 = vunpack.c.h.b16 %v129
    %v472 = vunpack.c.l.b16 %v130
    %v473 = vunpack.c.h.b16 %v130
    %v474 = vunpack.c.l.b16 %v131
    %v475 = vunpack.c.h.b16 %v131
    %v476 = vunpack.c.l.b16 %v132
    %v477 = vunpack.c.h.b16 %v132
    %v478 = vunpack.c.l.b16 %v133
    %v479 = vunpack.c.h.b16 %v133
    %v480 = vunpack.c.l.b16 %v134
    %v481 = vunpack.c.h.b16 %v134
    %v482 = vunpack.c.l.b16 %v135
    %v483 = vunpack.c.h.b16 %v135
    %v484 = vunpack.c.l.b16 %v136
    %v485 = vunpack.c.h.b16 %v136
    %v486 = vunpack.c.l.b16 %v137
    %v487 = vunpack.c.h.b16 %v137
    %v488 = vunpack.c.l.b16 %v138
    %v489 = vunpack.c.h.b16 %v138
    %v490 = vunpack.c.l.b16 %v139
    %v491 = vunpack.c.h.b16 %v139
    %v492 = vunpack.c.l.b16 %v140
    %v493 = vunpack.c.h.b16 %v140
    %v494 = vunpack.c.l.b16 %v141
    %v495 = vunpack.c.h.b16 %v141
    %v496 = vunpack.c.l.b16 %v142
    %v497 = vunpack.c.h.b16 %v142
    %v498 = vunpack.c.l.b16 %v143
    %v499 = vunpack.c.h.b16 %v143
    %v500 = vunpack.c.l.b16 %v144
    %v501 = vunpack.c.h.b16 %v144
    %v502 = vunpack.c.l.b16 %v145
    %v503 = vunpack.c.h.b16 %v145
    %v504 = vunpack.c.l.b16 %v146
    %v505 = vunpack.c.h.b16 %v146
    %v506 = vunpack.c.l.b16 %v147
    %v507 = vunpack.c.h.b16 %v147
    %v508 = vunpack.c.l.b16 %v148
    %v509 = vunpack.c.h.b16 %v148
    %v510 = vunpack.c.l.b16 %v149
    %v511 = vunpack.c.h.b16 %v149
    %v512 = vunpack.c.l.b16 %v150
    %v513 = vunpack.c.h.b16 %v150
    %v514 = vunpack.c.l.b16 %v151
    %v515 = vunpack.c.h.b16 %v151
    %v516 = vunpack.c.l.b16 %v152
    %v517 = vunpack.c.h.b16 %v152
    %v518 = vunpack.c.l.b16 %v153
    %v519 = vunpack.c.h.b16 %v153
    %v520 = vunpack.c.l.b16 %v154
    %v521 = vunpack.c.h.b16 %v154
    %v522 = vunpack.c.l.b16 %v155
    %v523 = vunpack.c.h.b16 %v155
    %v524 = vunpack.c.l.b16 %v156
    %v525 = vunpack.c.h.b16 %v156
    %v526 = vunpack.c.l.b16 %v157
    %v527 = vunpack.c.h.b16 %v157
    %v528 = vunpack.c.l.b16 %v158
    %v529 = vunpack.c.h.b16 %v158
    %v530 = vunpack.c.l.b16 %v159
    %v531 = vunpack.c.h.b16 %v159
    %v532 = vunpack.c.l.b16 %v160
    %v533 = vunpack.c.h.b16 %v160
    %v534 = vunpack.c.l.b16 %v161
    %v535 = vunpack.c.h.b16 %v161
    %v536 = vunpack.c.l.b16 %v162
    %v537 = vunpack.c.h.b16 %v162
    %v538 = vunpack.c.l.b16 %v163
    %v539 = vunpack.c.h.b16 %v163
    %v540 = vunpack.c.l.b16 %v164
    %v541 = vunpack.c.h.b16 %v164
    %v542 = vunpack.c.l.b16 %v165
    %v543 = vunpack.c.h.b16 %v165
    %v544 = vunpack.c.l.b16 %v166
    %v545 = vunpack.c.h.b16 %v166
    %v546 = vunpack.c.l.b16 %v167
    %v547 = vunpack.c.h.b16 %v167
    %v548 = vunpack.c.l.b16 %v168
    %v549 = vunpack.c.h.b16 %v168
    %v550 = vunpack.c.l.b16 %v169
    %v551 = vunpack.c.h.b16 %v169
    %v552 = vunpack.c.l.b16 %v170
    %v553 = vunpack.c.h.b16 %v170
    %v554 = vunpack.c.l.b16 %v171
    %v555 = vunpack.c.h.b16 %v171
    %v556 = vunpack.c.l.b16 %v172
    %v557 = vunpack.c.h.b16 %v172
    %v558 = vunpack.c.l.b16 %v173
    %v559 = vunpack.c.h.b16 %v173
    %v560 = vunpack.c.l.b16 %v174
    %v561 = vunpack.c.h.b16 %v174
    %v562 = vunpack.c.l.b16 %v175
    %v563 = vunpack.c.h.b16 %v175
    %v564 = vunpack.c.l.b16 %v176
    %v565 = vunpack.c.h.b16 %v176
    %v566 = vunpack.c.l.b16 %v177
    %v567 = vunpack.c.h.b16 %v177
    %v568 = vunpack.c.l.b16 %v178
    %v569 = vunpack.c.h.b16 %v178
    %v570 = vunpack.c.l.b16 %v179
    %v571 = vunpack.c.h.b16 %v179
    %v572 = vunpack.c.l.b16 %v180
    %v573 = vunpack.c.h.b16 %v180
    %v574 = vunpack.c.l.b16 %v181
    %v575 = vunpack.c.h.b16 %v181
    %v576 = vunpack.c.l.b16 %v182
    %v577 = vunpack.c.h.b16 %v182
    %v578 = vunpack.c.l.b16 %v183
    %v579 = vunpack.c.h.b16 %v183
    %v580 = vunpack.c.l.b16 %v184
    %v581 = vunpack.c.h.b16 %v184
    %v582 = vunpack.c.l.b16 %v185
    %v583 = vunpack.c.h.b16 %v185
    %v584 = vunpack.c.l.b16 %v186
    %v585 = vunpack.c.h.b16 %v186
    %v586 = vunpack.c.l.b16 %v187
    %v587 = vunpack.c.h.b16 %v187
    %v588 = vunpack.c.l.b16 %v188
    %v589 = vunpack.c.h.b16 %v188
    %v590 = vunpack.c.l.b16 %v189
    %v591 = vunpack.c.h.b16 %v189
    %v592 = vunpack.c.l.b16 %v190
    %v593 = vunpack.c.h.b16 %v190
    %v594 = vunpack.c.l.b16 %v191
    %v595 = vunpack.c.h.b16 %v191
    %v596 = vunpack.c.l.b16 %v192
    %v597 = vunpack.c.h.b16 %v192
    %v598 = vunpack.c.l.b16 %v193
    %v599 = vunpack.c.h.b16 %v193
    %v600 = vunpack.c.l.b16 %v194
    %v601 = vunpack.c.h.b16 %v194
    %v602 = vunpack.c.l.b16 %v195
    %v603 = vunpack.c.h.b16 %v195
    %v604 = vunpack.c.l.b16 %v196
    %v605 = vunpack.c.h.b16 %v196
    %v606 = vunpack.c.l.b16 %v197
    %v607 = vunpack.c.h.b16 %v197
    %v608 = vunpack.c.l.b16 %v198
    %v609 = vunpack.c.h.b16 %v198
    %v610 = vunpack.c.l.b16 %v199
    %v611 = vunpack.c.h.b16 %v199
    %v612 = vunpack.c.l.b16 %v200
    %v613 = vunpack.c.h.b16 %v200
    %v614 = vunpack.c.l.b16 %v201
    %v615 = vunpack.c.h.b16 %v201
    %v616 = vunpack.c.l.b16 %v202
    %v617 = vunpack.c.h.b16 %v202
    %v618 = vunpack.c.l.b16 %v203
    %v619 = vunpack.c.h.b16 %v203
    %v620 = vunpack.c.l.b16 %v204
    %v621 = vunpack.c.h.b16 %v204
    %v622 = vunpack.c.l.b16 %v205
    %v623 = vunpack.c.h.b16 %v205
    %v624 = vunpack.c.l.b16 %v206
    %v625 = vunpack.c.h.b16 %v206
    %v626 = vunpack.c.l.b16 %v207
    %v627 = vunpack.c.h.b16 %v207
    %v628 = vunpack.c.l.b16 %v208
    %v629 = vunpack.c.h.b16 %v208
    %v630 = vunpack.c.l.b16 %v209
    %v631 = vunpack.c.h.b16 %v209
    %v632 = vunpack.c.l.b16 %v210
    %v633 = vunpack.c.h.b16 %v210
    %v634 = vunpack.c.l.b16 %v211
    %v635 = vunpack.c.h.b16 %v211
    %v636 = vunpack.c.l.b16 %v212
    %v637 = vunpack.c.h.b16 %v212
    %v638 = vunpack.c.l.b16 %v213
    %v639 = vunpack.c.h.b16 %v213
    %v640 = vunpack.c.l.b16 %v214
    %v641 = vunpack.c.h.b16 %v214
    %v642 = vunpack.c.l.b16 %v215
    %v643 = vunpack.c.h.b16 %v215
    %v644 = vunpack.c.l.b16 %v216
    %v645 = vunpack.c.h.b16 %v216
    %v646 = vunpack.c.l.b16 %v217
    %v647 = vunpack.c.h.b16 %v217
    %v648 = vunpack.c.l.b16 %v218
    %v649 = vunpack.c.h.b16 %v218
    %v650 = vunpack.c.l.b16 %v219
    %v651 = vunpack.c.h.b16 %v219
    %v652 = vunpack.c.l.b16 %v220
    %v653 = vunpack.c.h.b16 %v220
    %v654 = vunpack.c.l.b16 %v221
    %v655 = vunpack.c.h.b16 %v221
    %v656 = vunpack.c.l.b16 %v222
    %v657 = vunpack.c.h.b16 %v222
    %v658 = vunpack.c.l.b16 %v223
    %v659 = vunpack.c.h.b16 %v223
    %v660 = vpack.c.b16 %v412, %v404
    %v661 = vpack.c.b16 %v413, %v405
    %v662 = vpack.c.b16 %v414, %v406
    %v663 = vpack.c.b16 %v415, %v407
    %v664 = vpack.c.b16 %v416, %v408
    %v665 = vpack.c.b16 %v417, %v409
    %v666 = vpack.c.b16 %v418, %v410
    %v667 = vpack.c.b16 %v419, %v411
    %v668 = vpack.c.b16 %v428, %v420
    %v669 = vpack.c.b16 %v429, %v421
    %v670 = vpack.c.b16 %v430, %v422
    %v671 = vpack.c.b16 %v431, %v423
    %v672 = vpack.c.b16 %v432, %v424
    %v673 = vpack.c.b16 %v433, %v425
    %v674 = vpack.c.b16 %v434, %v426
    %v675 = vpack.c.b16 %v435, %v427
    %v676 = vpack.c.b16 %v444, %v436
    %v677 = vpack.c.b16 %v445, %v437
    %v678 = vpack.c.b16 %v446, %v438
    %v679 = vpack.c.b16 %v447, %v439
    %v680 = vpack.c.b16 %v448, %v440
    %v681 = vpack.c.b16 %v449, %v441
    %v682 = vpack.c.b16 %v450, %v442
    %v683 = vpack.c.b16 %v451, %v443
    %v684 = vpack.c.b16 %v460, %v452
    %v685 = vpack.c.b16 %v461, %v453
    %v686 = vpack.c.b16 %v462, %v454
    %v687 = vpack.c.b16 %v463, %v455
    %v688 = vpack.c.b16 %v464, %v456
    %v689 = vpack.c.b16 %v465, %v457
    %v690 = vpack.c.b16 %v466, %v458
    %v691 = vpack.c.b16 %v467, %v459
    %v692 = vpack.c.b16 %v476, %v468
    %v693 = vpack.c.b16 %v477, %v469
    %v694 = vpack.c.b16 %v478, %v470
    %v695 = vpack.c.b16 %v479, %v471
    %v696 = vpack.c.b16 %v480, %v472
    %v697 = vpack.c.b16 %v481, %v473
    %v698 = vpack.c.b16 %v482, %v474
    %v699 = vpack.c.b16 %v483, %v475
    %v700 = vpack.c.b16 %v492, %v484
    %v701 = vpack.c.b16 %v493, %v485
    %v702 = vpack.c.b16 %v494, %v486
    %v703 = vpack.c.b16 %v495, %v487
    %v704 = vpack.c.b16 %v496, %v488
    %v705 = vpack.c.b16 %v497, %v489
    %v706 = vpack.c.b16 %v498, %v490
    %v707 = vpack.c.b16 %v499, %v491
    %v708 = vpack.c.b16 %v508, %v500
    %v709 = vpack.c.b16 %v509, %v501
    %v710 = vpack.c.b16 %v510, %v502
    %v711 = vpack.c.b16 %v511, %v503
    %v712 = vpack.c.b16 %v512, %v504
    %v713 = vpack.c.b16 %v513, %v505
    %v714 = vpack.c.b16 %v514, %v506
    %v715 = vpack.c.b16 %v515, %v507
    %v716 = vpack.c.b16 %v524, %v516
    %v717 = vpack.c.b16 %v525, %v517
    %v718 = vpack.c.b16 %v526, %v518
    %v719 = vpack.c.b16 %v527, %v519
    %v720 = vpack.c.b16 %v528, %v520
    %v721 = vpack.c.b16 %v529, %v521
    %v722 = vpack.c.b16 %v530, %v522
    %v723 = vpack.c.b16 %v531, %v523
    %v724 = vpack.c.b16 %v540, %v532
    %v725 = vpack.c.b16 %v541, %v533
    %v726 = vpack.c.b16 %v542, %v534
    %v727 = vpack.c.b16 %v543, %v535
    %v728 = vpack.c.b16 %v544, %v536
    %v729 = vpack.c.b16 %v545, %v537
    %v730 = vpack.c.b16 %v546, %v538
    %v731 = vpack.c.b16 %v547, %v539
    %v732 = vpack.c.b16 %v556, %v548
    %v733 = vpack.c.b16 %v557, %v549
    %v734 = vpack.c.b16 %v558, %v550
    %v735 = vpack.c.b16 %v559, %v551
    %v736 = vpack.c.b16 %v560, %v552
    %v737 = vpack.c.b16 %v561, %v553
    %v738 = vpack.c.b16 %v562, %v554
    %v739 = vpack.c.b16 %v563, %v555
    %v740 = vpack.c.b16 %v572, %v564
    %v741 = vpack.c.b16 %v573, %v565
    %v742 = vpack.c.b16 %v574, %v566
    %v743 = vpack.c.b16 %v575, %v567
    %v744 = vpack.c.b16 %v576, %v568
    %v745 = vpack.c.b16 %v577, %v569
    %v746 = vpack.c.b16 %v578, %v570
    %v747 = vpack.c.b16 %v579, %v571
    %v748 = vpack.c.b16 %v588, %v580
    %v749 = vpack.c.b16 %v589, %v581
    %v750 = vpack.c.b16 %v590, %v582
    %v751 = vpack.c.b16 %v591, %v583
    %v752 = vpack.c.b16 %v592, %v584
    %v753 = vpack.c.b16 %v593, %v585
    %v754 = vpack.c.b16 %v594, %v586
    %v755 = vpack.c.b16 %v595, %v587
    %v756 = vpack.c.b16 %v604, %v596
    %v757 = vpack.c.b16 %v605, %v597
    %v758 = vpack.c.b16 %v606, %v598
    %v759 = vpack.c.b16 %v607, %v599
    %v760 = vpack.c.b16 %v608, %v600
    %v761 = vpack.c.b16 %v609, %v601
    %v762 = vpack.c.b16 %v610, %v602
    %v763 = vpack.c.b16 %v611, %v603
    %v764 = vpack.c.b16 %v620, %v612
    %v765 = vpack.c.b16 %v621, %v613
    %v766 = vpack.c.b16 %v622, %v614
    %v767 = vpack.c.b16 %v623, %v615
    %v768 = vpack.c.b16 %v624, %v616
    %v769 = vpack.c.b16 %v625, %v617
    %v770 = vpack.c.b16 %v626, %v618
    %v771 = vpack.c.b16 %v627, %v619
    %v772 = vpack.c.b16 %v636, %v628
    %v773 = vpack.c.b16 %v637, %v629
    %v774 = vpack.c.b16 %v638, %v630
    %v775 = vpack.c.b16 %v639, %v631
    %v776 = vpack.c.b16 %v640, %v632
    %v777 = vpack.c.b16 %v641, %v633
    %v778 = vpack.c.b16 %v642, %v634
    %v779 = vpack.c.b16 %v643, %v635
    %v780 = vpack.c.b16 %v652, %v644
    %v781 = vpack.c.b16 %v653, %v645
    %v782 = vpack.c.b16 %v654, %v646
    %v783 = vpack.c.b16 %v655, %v647
    %v784 = vpack.c.b16 %v656, %v648
    %v785 = vpack.c.b16 %v657, %v649
    %v786 = vpack.c.b16 %v658, %v650
    %v787 = vpack.c.b16 %v659, %v651
    %916 = vmatprep.subr.bf16.mxu0 %v661
    %917 = vmatpush1.bf16.msra.mxu0 %v660
    %918 = vmatprep.subr.bf16.mxu0 %v669
    %919 = vmatpush1.bf16.msra.mxu0 %v668
    %920 = vmatprep.subr.bf16.mxu0 %v677
    %921 = vmatpush1.bf16.msra.mxu0 %v676
    %922 = vmatprep.subr.bf16.mxu0 %v685
    %923 = vmatpush1.bf16.msra.mxu0 %v684
    %924 = vmatprep.subr.bf16.mxu0 %v693
    %925 = vmatpush1.bf16.msra.mxu0 %v692
    %926 = vmatprep.subr.bf16.mxu0 %v701
    %927 = vmatpush1.bf16.msra.mxu0 %v700
    %928 = vmatprep.subr.bf16.mxu0 %v709
    %929 = vmatpush1.bf16.msra.mxu0 %v708
    %930 = vmatprep.subr.bf16.mxu0 %v717
    %931 = vmatpush1.bf16.msra.mxu0 %v716
    %932 = vmatprep.subr.bf16.mxu0 %v725
    %933 = vmatpush1.bf16.msra.mxu0 %v724
    %934 = vmatprep.subr.bf16.mxu0 %v733
    %935 = vmatpush1.bf16.msra.mxu0 %v732
    %936 = vmatprep.subr.bf16.mxu0 %v741
    %937 = vmatpush1.bf16.msra.mxu0 %v740
    %938 = vmatprep.subr.bf16.mxu0 %v749
    %939 = vmatpush1.bf16.msra.mxu0 %v748
    %940 = vmatprep.subr.bf16.mxu0 %v757
    %941 = vmatpush1.bf16.msra.mxu0 %v756
    %942 = vmatprep.subr.bf16.mxu0 %v765
    %943 = vmatpush1.bf16.msra.mxu0 %v764
    %944 = vmatprep.subr.bf16.mxu0 %v773
    %945 = vmatpush1.bf16.msra.mxu0 %v772
    %946 = vmatprep.subr.bf16.mxu0 %v781
    %947 = vmatpush1.bf16.msra.mxu0 %v780
    %948 = vmatprep.mubr.bf16.mxu0 %v273
    %949 = vmatmul.mubr.bf16.gmra.mrb[0].mxu0 %v272
    %v950 = vpop.f32.mrb[0].mxu0
    %v951 = vadd.f32 %v229, %v950
    %v952 = vpop.f32.mrb[0].mxu0
    %v953 = vadd.f32 %v233, %v952
    %v954 = vpop.f32.mrb[0].mxu0
    %v955 = vadd.f32 %v229, %v954
    %v956 = vpop.f32.mrb[0].mxu0
    %v957 = vadd.f32 %v233, %v956
    %958 = vdwg.mxu0
    %959 = vmatprep.subr.bf16.mxu0 %v663
    %960 = vmatpush1.bf16.msra.mxu0 %v662
    %961 = vmatprep.subr.bf16.mxu0 %v671
    %962 = vmatpush1.bf16.msra.mxu0 %v670
    %963 = vmatprep.subr.bf16.mxu0 %v679
    %964 = vmatpush1.bf16.msra.mxu0 %v678
    %965 = vmatprep.subr.bf16.mxu0 %v687
    %966 = vmatpush1.bf16.msra.mxu0 %v686
    %967 = vmatprep.subr.bf16.mxu0 %v695
    %968 = vmatpush1.bf16.msra.mxu0 %v694
    %969 = vmatprep.subr.bf16.mxu0 %v703
    %970 = vmatpush1.bf16.msra.mxu0 %v702
    %971 = vmatprep.subr.bf16.mxu0 %v711
    %972 = vmatpush1.bf16.msra.mxu0 %v710
    %973 = vmatprep.subr.bf16.mxu0 %v719
    %974 = vmatpush1.bf16.msra.mxu0 %v718
    %975 = vmatprep.subr.bf16.mxu0 %v727
    %976 = vmatpush1.bf16.msra.mxu0 %v726
    %977 = vmatprep.subr.bf16.mxu0 %v735
    %978 = vmatpush1.bf16.msra.mxu0 %v734
    %979 = vmatprep.subr.bf16.mxu0 %v743
    %980 = vmatpush1.bf16.msra.mxu0 %v742
    %981 = vmatprep.subr.bf16.mxu0 %v751
    %982 = vmatpush1.bf16.msra.mxu0 %v750
    %983 = vmatprep.subr.bf16.mxu0 %v759
    %984 = vmatpush1.bf16.msra.mxu0 %v758
    %985 = vmatprep.subr.bf16.mxu0 %v767
    %986 = vmatpush1.bf16.msra.mxu0 %v766
    %987 = vmatprep.subr.bf16.mxu0 %v775
    %988 = vmatpush1.bf16.msra.mxu0 %v774
    %989 = vmatprep.subr.bf16.mxu0 %v783
    %990 = vmatpush1.bf16.msra.mxu0 %v782
    %991 = vmatprep.mubr.bf16.mxu0 %v273
    %992 = vmatmul.mubr.bf16.gmra.mrb[0].mxu0 %v272
    %v993 = vpop.f32.mrb[0].mxu0
    %v994 = vadd.f32 %v237, %v993
    %v995 = vpop.f32.mrb[0].mxu0
    %v996 = vadd.f32 %v241, %v995
    %v997 = vpop.f32.mrb[0].mxu0
    %v998 = vadd.f32 %v237, %v997
    %v999 = vpop.f32.mrb[0].mxu0
    %v1000 = vadd.f32 %v241, %v999
    %1001 = vdwg.mxu0
    %1002 = vmatprep.subr.bf16.mxu0 %v665
    %1003 = vmatpush1.bf16.msra.mxu0 %v664
    %1004 = vmatprep.subr.bf16.mxu0 %v673
    %1005 = vmatpush1.bf16.msra.mxu0 %v672
    %1006 = vmatprep.subr.bf16.mxu0 %v681
    %1007 = vmatpush1.bf16.msra.mxu0 %v680
    %1008 = vmatprep.subr.bf16.mxu0 %v689
    %1009 = vmatpush1.bf16.msra.mxu0 %v688
    %1010 = vmatprep.subr.bf16.mxu0 %v697
    %1011 = vmatpush1.bf16.msra.mxu0 %v696
    %1012 = vmatprep.subr.bf16.mxu0 %v705
    %1013 = vmatpush1.bf16.msra.mxu0 %v704
    %1014 = vmatprep.subr.bf16.mxu0 %v713
    %1015 = vmatpush1.bf16.msra.mxu0 %v712
    %1016 = vmatprep.subr.bf16.mxu0 %v721
    %1017 = vmatpush1.bf16.msra.mxu0 %v720
    %1018 = vmatprep.subr.bf16.mxu0 %v729
    %1019 = vmatpush1.bf16.msra.mxu0 %v728
    %1020 = vmatprep.subr.bf16.mxu0 %v737
    %1021 = vmatpush1.bf16.msra.mxu0 %v736
    %1022 = vmatprep.subr.bf16.mxu0 %v745
    %1023 = vmatpush1.bf16.msra.mxu0 %v744
    %1024 = vmatprep.subr.bf16.mxu0 %v753
    %1025 = vmatpush1.bf16.msra.mxu0 %v752
    %1026 = vmatprep.subr.bf16.mxu0 %v761
    %1027 = vmatpush1.bf16.msra.mxu0 %v760
    %1028 = vmatprep.subr.bf16.mxu0 %v769
    %1029 = vmatpush1.bf16.msra.mxu0 %v768
    %1030 = vmatprep.subr.bf16.mxu0 %v777
    %1031 = vmatpush1.bf16.msra.mxu0 %v776
    %1032 = vmatprep.subr.bf16.mxu0 %v785
    %1033 = vmatpush1.bf16.msra.mxu0 %v784
    %1034 = vmatprep.mubr.bf16.mxu0 %v273
    %1035 = vmatmul.mubr.bf16.gmra.mrb[0].mxu0 %v272
    %v1036 = vpop.f32.mrb[0].mxu0
    %v1037 = vadd.f32 %v245, %v1036
    %v1038 = vpop.f32.mrb[0].mxu0
    %v1039 = vadd.f32 %v249, %v1038
    %v1040 = vpop.f32.mrb[0].mxu0
    %v1041 = vadd.f32 %v245, %v1040
    %v1042 = vpop.f32.mrb[0].mxu0
    %v1043 = vadd.f32 %v249, %v1042
    %1044 = vdwg.mxu0
    %1045 = vmatprep.subr.bf16.mxu0 %v667
    %1046 = vmatpush1.bf16.msra.mxu0 %v666
    %1047 = vmatprep.subr.bf16.mxu0 %v675
    %1048 = vmatpush1.bf16.msra.mxu0 %v674
    %1049 = vmatprep.subr.bf16.mxu0 %v683
    %1050 = vmatpush1.bf16.msra.mxu0 %v682
    %1051 = vmatprep.subr.bf16.mxu0 %v691
    %1052 = vmatpush1.bf16.msra.mxu0 %v690
    %1053 = vmatprep.subr.bf16.mxu0 %v699
    %1054 = vmatpush1.bf16.msra.mxu0 %v698
    %1055 = vmatprep.subr.bf16.mxu0 %v707
    %1056 = vmatpush1.bf16.msra.mxu0 %v706
    %1057 = vmatprep.subr.bf16.mxu0 %v715
    %1058 = vmatpush1.bf16.msra.mxu0 %v714
    %1059 = vmatprep.subr.bf16.mxu0 %v723
    %1060 = vmatpush1.bf16.msra.mxu0 %v722
    %1061 = vmatprep.subr.bf16.mxu0 %v731
    %1062 = vmatpush1.bf16.msra.mxu0 %v730
    %1063 = vmatprep.subr.bf16.mxu0 %v739
    %1064 = vmatpush1.bf16.msra.mxu0 %v738
    %1065 = vmatprep.subr.bf16.mxu0 %v747
    %1066 = vmatpush1.bf16.msra.mxu0 %v746
    %1067 = vmatprep.subr.bf16.mxu0 %v755
    %1068 = vmatpush1.bf16.msra.mxu0 %v754
    %1069 = vmatprep.subr.bf16.mxu0 %v763
    %1070 = vmatpush1.bf16.msra.mxu0 %v762
    %1071 = vmatprep.subr.bf16.mxu0 %v771
    %1072 = vmatpush1.bf16.msra.mxu0 %v770
    %1073 = vmatprep.subr.bf16.mxu0 %v779
    %1074 = vmatpush1.bf16.msra.mxu0 %v778
    %1075 = vmatprep.subr.bf16.mxu0 %v787
    %1076 = vmatpush1.bf16.msra.mxu0 %v786
    %1077 = vmatprep.mubr.bf16.mxu0 %v273
    %1078 = vmatmul.mubr.bf16.gmra.mrb[0].mxu0 %v272
    %v1079 = vpop.f32.mrb[0].mxu0
    %v1080 = vadd.f32 %v253, %v1079
    %v1081 = vpop.f32.mrb[0].mxu0
    %v1082 = vadd.f32 %v257, %v1081
    %v1083 = vpop.f32.mrb[0].mxu0
    %v1084 = vadd.f32 %v253, %v1083
    %v1085 = vpop.f32.mrb[0].mxu0
    %v1086 = vadd.f32 %v257, %v1085
    %1087 = vdwg.mxu0
    %v1088 = vmax.f32 %v951, 0.0
    %v1089 = vmax.f32 %v953, 0.0
    %v1090 = vmax.f32 %v994, 0.0
    %v1091 = vmax.f32 %v996, 0.0
    %v1092 = vmax.f32 %v1037, 0.0
    %v1093 = vmax.f32 %v1039, 0.0
    %v1094 = vmax.f32 %v1080, 0.0
    %v1095 = vmax.f32 %v1082, 0.0
    %v1096 = vmax.f32 %v955, 0.0
    %v1097 = vmax.f32 %v957, 0.0
    %v1098 = vmax.f32 %v998, 0.0
    %v1099 = vmax.f32 %v1000, 0.0
    %v1100 = vmax.f32 %v1041, 0.0
    %v1101 = vmax.f32 %v1043, 0.0
    %v1102 = vmax.f32 %v1084, 0.0
    %v1103 = vmax.f32 %v1086, 0.0
    %1105 = vset.pattern.permute.xlu0 0
    %1106 = vperm.xlu0 %1105, %v94
    %v1107 = vpop.permute.xlu0 %1106
    %1110 = vset.pattern.permute.xlu0 0
    %1111 = vperm.xlu0 %1110, %v95
    %v1112 = vpop.permute.xlu0 %1111
    %v1114 = vmul.f32 %v1088, %v1107
    %v1115 = vmul.f32 %v1096, %v1112
    %v1116 = vpack.c.bf16 %v1115, %v1114
    %1117 = vset.pattern.permute.xlu0 1
    %1118 = vperm.xlu0 %1117, %v94
    %v1119 = vpop.permute.xlu0 %1118
    %1121 = vset.pattern.permute.xlu0 1
    %1122 = vperm.xlu0 %1121, %v95
    %v1123 = vpop.permute.xlu0 %1122
    %v1125 = vmul.f32 %v1089, %v1119
    %v1126 = vmul.f32 %v1097, %v1123
    %v1127 = vpack.c.bf16 %v1126, %v1125
    %1128 = vset.pattern.permute.xlu0 2
    %1129 = vperm.xlu0 %1128, %v94
    %v1130 = vpop.permute.xlu0 %1129
    %1132 = vset.pattern.permute.xlu0 2
    %1133 = vperm.xlu0 %1132, %v95
    %v1134 = vpop.permute.xlu0 %1133
    %v1136 = vmul.f32 %v1090, %v1130
    %v1137 = vmul.f32 %v1098, %v1134
    %v1138 = vpack.c.bf16 %v1137, %v1136
    %1139 = vset.pattern.permute.xlu0 3
    %1140 = vperm.xlu0 %1139, %v94
    %v1141 = vpop.permute.xlu0 %1140
    %1143 = vset.pattern.permute.xlu0 3
    %1144 = vperm.xlu0 %1143, %v95
    %v1145 = vpop.permute.xlu0 %1144
    %v1147 = vmul.f32 %v1091, %v1141
    %v1148 = vmul.f32 %v1099, %v1145
    %v1149 = vpack.c.bf16 %v1148, %v1147
    %1150 = vset.pattern.permute.xlu0 4
    %1151 = vperm.xlu0 %1150, %v94
    %v1152 = vpop.permute.xlu0 %1151
    %1154 = vset.pattern.permute.xlu0 4
    %1155 = vperm.xlu0 %1154, %v95
    %v1156 = vpop.permute.xlu0 %1155
    %v1158 = vmul.f32 %v1092, %v1152
    %v1159 = vmul.f32 %v1100, %v1156
    %v1160 = vpack.c.bf16 %v1159, %v1158
    %1161 = vset.pattern.permute.xlu0 5
    %1162 = vperm.xlu0 %1161, %v94
    %v1163 = vpop.permute.xlu0 %1162
    %1165 = vset.pattern.permute.xlu0 5
    %1166 = vperm.xlu0 %1165, %v95
    %v1167 = vpop.permute.xlu0 %1166
    %v1169 = vmul.f32 %v1093, %v1163
    %v1170 = vmul.f32 %v1101, %v1167
    %v1171 = vpack.c.bf16 %v1170, %v1169
    %1172 = vset.pattern.permute.xlu0 6
    %1173 = vperm.xlu0 %1172, %v94
    %v1174 = vpop.permute.xlu0 %1173
    %1176 = vset.pattern.permute.xlu0 6
    %1177 = vperm.xlu0 %1176, %v95
    %v1178 = vpop.permute.xlu0 %1177
    %v1180 = vmul.f32 %v1094, %v1174
    %v1181 = vmul.f32 %v1102, %v1178
    %v1182 = vpack.c.bf16 %v1181, %v1180
    %1183 = vset.pattern.permute.xlu0 7
    %1184 = vperm.xlu0 %1183, %v94
    %v1185 = vpop.permute.xlu0 %1184
    %1187 = vset.pattern.permute.xlu0 7
    %1188 = vperm.xlu0 %1187, %v95
    %v1189 = vpop.permute.xlu0 %1188
    %v1191 = vmul.f32 %v1095, %v1185
    %v1192 = vmul.f32 %v1103, %v1189
    %v1193 = vpack.c.bf16 %v1192, %v1191
    %v1194 = vld [vmem:[#allocation5] sm:$0xff]
    %v1195 = vld [vmem:[#allocation5 + $0x8] sm:$0xff]
    %v1196 = vld [vmem:[#allocation5 + $0x10] sm:$0xff]
    %v1197 = vld [vmem:[#allocation5 + $0x18] sm:$0xff]
    %v1198 = vld [vmem:[#allocation5 + $0x20] sm:$0xff]
    %v1199 = vld [vmem:[#allocation5 + $0x28] sm:$0xff]
    %v1200 = vld [vmem:[#allocation5 + $0x30] sm:$0xff]
    %v1201 = vld [vmem:[#allocation5 + $0x38] sm:$0xff]
    %v1202 = vld [vmem:[#allocation5 + $0x40] sm:$0xff]
    %v1203 = vld [vmem:[#allocation5 + $0x48] sm:$0xff]
    %v1204 = vld [vmem:[#allocation5 + $0x50] sm:$0xff]
    %v1205 = vld [vmem:[#allocation5 + $0x58] sm:$0xff]
    %v1206 = vld [vmem:[#allocation5 + $0x60] sm:$0xff]
    %v1207 = vld [vmem:[#allocation5 + $0x68] sm:$0xff]
    %v1208 = vld [vmem:[#allocation5 + $0x70] sm:$0xff]
    %v1209 = vld [vmem:[#allocation5 + $0x78] sm:$0xff]
    %v1210 = vld [vmem:[#allocation5 + $0x80] sm:$0xff]
    %v1211 = vld [vmem:[#allocation5 + $0x88] sm:$0xff]
    %v1212 = vld [vmem:[#allocation5 + $0x90] sm:$0xff]
    %v1213 = vld [vmem:[#allocation5 + $0x98] sm:$0xff]
    %v1214 = vld [vmem:[#allocation5 + $0xa0] sm:$0xff]
    %v1215 = vld [vmem:[#allocation5 + $0xa8] sm:$0xff]
    %v1216 = vld [vmem:[#allocation5 + $0xb0] sm:$0xff]
    %v1217 = vld [vmem:[#allocation5 + $0xb8] sm:$0xff]
    %v1218 = vld [vmem:[#allocation5 + $0xc0] sm:$0xff]
    %v1219 = vld [vmem:[#allocation5 + $0xc8] sm:$0xff]
    %v1220 = vld [vmem:[#allocation5 + $0xd0] sm:$0xff]
    %v1221 = vld [vmem:[#allocation5 + $0xd8] sm:$0xff]
    %v1222 = vld [vmem:[#allocation5 + $0xe0] sm:$0xff]
    %v1223 = vld [vmem:[#allocation5 + $0xe8] sm:$0xff]
    %v1224 = vld [vmem:[#allocation5 + $0xf0] sm:$0xff]
    %v1225 = vld [vmem:[#allocation5 + $0xf8] sm:$0xff]
    %v1226 = vld [vmem:[#allocation5 + $0x100] sm:$0xff]
    %v1227 = vld [vmem:[#allocation5 + $0x108] sm:$0xff]
    %v1228 = vld [vmem:[#allocation5 + $0x110] sm:$0xff]
    %v1229 = vld [vmem:[#allocation5 + $0x118] sm:$0xff]
    %v1230 = vld [vmem:[#allocation5 + $0x120] sm:$0xff]
    %v1231 = vld [vmem:[#allocation5 + $0x128] sm:$0xff]
    %v1232 = vld [vmem:[#allocation5 + $0x130] sm:$0xff]
    %v1233 = vld [vmem:[#allocation5 + $0x138] sm:$0xff]
    %v1234 = vld [vmem:[#allocation5 + $0x140] sm:$0xff]
    %v1235 = vld [vmem:[#allocation5 + $0x148] sm:$0xff]
    %v1236 = vld [vmem:[#allocation5 + $0x150] sm:$0xff]
    %v1237 = vld [vmem:[#allocation5 + $0x158] sm:$0xff]
    %v1238 = vld [vmem:[#allocation5 + $0x160] sm:$0xff]
    %v1239 = vld [vmem:[#allocation5 + $0x168] sm:$0xff]
    %v1240 = vld [vmem:[#allocation5 + $0x170] sm:$0xff]
    %v1241 = vld [vmem:[#allocation5 + $0x178] sm:$0xff]
    %v1242 = vld [vmem:[#allocation5 + $0x180] sm:$0xff]
    %v1243 = vld [vmem:[#allocation5 + $0x188] sm:$0xff]
    %v1244 = vld [vmem:[#allocation5 + $0x190] sm:$0xff]
    %v1245 = vld [vmem:[#allocation5 + $0x198] sm:$0xff]
    %v1246 = vld [vmem:[#allocation5 + $0x1a0] sm:$0xff]
    %v1247 = vld [vmem:[#allocation5 + $0x1a8] sm:$0xff]
    %v1248 = vld [vmem:[#allocation5 + $0x1b0] sm:$0xff]
    %v1249 = vld [vmem:[#allocation5 + $0x1b8] sm:$0xff]
    %v1250 = vld [vmem:[#allocation5 + $0x1c0] sm:$0xff]
    %v1251 = vld [vmem:[#allocation5 + $0x1c8] sm:$0xff]
    %v1252 = vld [vmem:[#allocation5 + $0x1d0] sm:$0xff]
    %v1253 = vld [vmem:[#allocation5 + $0x1d8] sm:$0xff]
    %v1254 = vld [vmem:[#allocation5 + $0x1e0] sm:$0xff]
    %v1255 = vld [vmem:[#allocation5 + $0x1e8] sm:$0xff]
    %v1256 = vld [vmem:[#allocation5 + $0x1f0] sm:$0xff]
    %v1257 = vld [vmem:[#allocation5 + $0x1f8] sm:$0xff]
    %v1258 = vld [vmem:[#allocation5 + $0x200] sm:$0xff]
    %v1259 = vld [vmem:[#allocation5 + $0x208] sm:$0xff]
    %v1260 = vld [vmem:[#allocation5 + $0x210] sm:$0xff]
    %v1261 = vld [vmem:[#allocation5 + $0x218] sm:$0xff]
    %v1262 = vld [vmem:[#allocation5 + $0x220] sm:$0xff]
    %v1263 = vld [vmem:[#allocation5 + $0x228] sm:$0xff]
    %v1264 = vld [vmem:[#allocation5 + $0x230] sm:$0xff]
    %v1265 = vld [vmem:[#allocation5 + $0x238] sm:$0xff]
    %v1266 = vld [vmem:[#allocation5 + $0x240] sm:$0xff]
    %v1267 = vld [vmem:[#allocation5 + $0x248] sm:$0xff]
    %v1268 = vld [vmem:[#allocation5 + $0x250] sm:$0xff]
    %v1269 = vld [vmem:[#allocation5 + $0x258] sm:$0xff]
    %v1270 = vld [vmem:[#allocation5 + $0x260] sm:$0xff]
    %v1271 = vld [vmem:[#allocation5 + $0x268] sm:$0xff]
    %v1272 = vld [vmem:[#allocation5 + $0x270] sm:$0xff]
    %v1273 = vld [vmem:[#allocation5 + $0x278] sm:$0xff]
    %v1274 = vld [vmem:[#allocation5 + $0x280] sm:$0xff]
    %v1275 = vld [vmem:[#allocation5 + $0x288] sm:$0xff]
    %v1276 = vld [vmem:[#allocation5 + $0x290] sm:$0xff]
    %v1277 = vld [vmem:[#allocation5 + $0x298] sm:$0xff]
    %v1278 = vld [vmem:[#allocation5 + $0x2a0] sm:$0xff]
    %v1279 = vld [vmem:[#allocation5 + $0x2a8] sm:$0xff]
    %v1280 = vld [vmem:[#allocation5 + $0x2b0] sm:$0xff]
    %v1281 = vld [vmem:[#allocation5 + $0x2b8] sm:$0xff]
    %v1282 = vld [vmem:[#allocation5 + $0x2c0] sm:$0xff]
    %v1283 = vld [vmem:[#allocation5 + $0x2c8] sm:$0xff]
    %v1284 = vld [vmem:[#allocation5 + $0x2d0] sm:$0xff]
    %v1285 = vld [vmem:[#allocation5 + $0x2d8] sm:$0xff]
    %v1286 = vld [vmem:[#allocation5 + $0x2e0] sm:$0xff]
    %v1287 = vld [vmem:[#allocation5 + $0x2e8] sm:$0xff]
    %v1288 = vld [vmem:[#allocation5 + $0x2f0] sm:$0xff]
    %v1289 = vld [vmem:[#allocation5 + $0x2f8] sm:$0xff]
    %v1290 = vld [vmem:[#allocation5 + $0x300] sm:$0xff]
    %v1291 = vld [vmem:[#allocation5 + $0x308] sm:$0xff]
    %v1292 = vld [vmem:[#allocation5 + $0x310] sm:$0xff]
    %v1293 = vld [vmem:[#allocation5 + $0x318] sm:$0xff]
    %v1294 = vld [vmem:[#allocation5 + $0x320] sm:$0xff]
    %v1295 = vld [vmem:[#allocation5 + $0x328] sm:$0xff]
    %v1296 = vld [vmem:[#allocation5 + $0x330] sm:$0xff]
    %v1297 = vld [vmem:[#allocation5 + $0x338] sm:$0xff]
    %v1298 = vld [vmem:[#allocation5 + $0x340] sm:$0xff]
    %v1299 = vld [vmem:[#allocation5 + $0x348] sm:$0xff]
    %v1300 = vld [vmem:[#allocation5 + $0x350] sm:$0xff]
    %v1301 = vld [vmem:[#allocation5 + $0x358] sm:$0xff]
    %v1302 = vld [vmem:[#allocation5 + $0x360] sm:$0xff]
    %v1303 = vld [vmem:[#allocation5 + $0x368] sm:$0xff]
    %v1304 = vld [vmem:[#allocation5 + $0x370] sm:$0xff]
    %v1305 = vld [vmem:[#allocation5 + $0x378] sm:$0xff]
    %v1306 = vld [vmem:[#allocation5 + $0x380] sm:$0xff]
    %v1307 = vld [vmem:[#allocation5 + $0x388] sm:$0xff]
    %v1308 = vld [vmem:[#allocation5 + $0x390] sm:$0xff]
    %v1309 = vld [vmem:[#allocation5 + $0x398] sm:$0xff]
    %v1310 = vld [vmem:[#allocation5 + $0x3a0] sm:$0xff]
    %v1311 = vld [vmem:[#allocation5 + $0x3a8] sm:$0xff]
    %v1312 = vld [vmem:[#allocation5 + $0x3b0] sm:$0xff]
    %v1313 = vld [vmem:[#allocation5 + $0x3b8] sm:$0xff]
    %v1314 = vld [vmem:[#allocation5 + $0x3c0] sm:$0xff]
    %v1315 = vld [vmem:[#allocation5 + $0x3c8] sm:$0xff]
    %v1316 = vld [vmem:[#allocation5 + $0x3d0] sm:$0xff]
    %v1317 = vld [vmem:[#allocation5 + $0x3d8] sm:$0xff]
    %v1318 = vld [vmem:[#allocation5 + $0x3e0] sm:$0xff]
    %v1319 = vld [vmem:[#allocation5 + $0x3e8] sm:$0xff]
    %v1320 = vld [vmem:[#allocation5 + $0x3f0] sm:$0xff]
    %v1321 = vld [vmem:[#allocation5 + $0x3f8] sm:$0xff]
    %v1322 = vpack.c.bf16 %v95, %v94
    %v1323 = vld [vmem:[%s5] sm:$0xff]
    %v1325 = vunpack.c.l.b16 %v1323
    %v1326 = vunpack.c.h.b16 %v1323
    %v1327 = vpack.c.b16 %v1325, %v1325
    %v1328 = vpack.c.b16 %v1326, %v1326
    %vm1329 = vcmask 64512
    %v1331 = vsel %vm1329, %v1322, 0
    %vm1333 = vcmask 1043456
    %v1335 = vsel %vm1333, %v1327, 0
    %v1338 = vsel %vm1333, %v1328, 0
    %1340 = vmatprep.subr.bf16.mxu0 %v1338
    %1341 = vmatpush1.bf16.msra.mxu0 %v1335
    %1342 = vmatprep.subr.bf16.mxu0 0
    %1343 = vmatpush1.bf16.msra.mxu0 0
    %1344 = vmatprep.subr.bf16.mxu0 0
    %1345 = vmatpush1.bf16.msra.mxu0 0
    %1346 = vmatprep.subr.bf16.mxu0 0
    %1347 = vmatpush1.bf16.msra.mxu0 0
    %1348 = vmatprep.subr.bf16.mxu0 0
    %1349 = vmatpush1.bf16.msra.mxu0 0
    %1350 = vmatprep.subr.bf16.mxu0 0
    %1351 = vmatpush1.bf16.msra.mxu0 0
    %1352 = vmatprep.subr.bf16.mxu0 0
    %1353 = vmatpush1.bf16.msra.mxu0 0
    %1354 = vmatprep.subr.bf16.mxu0 0
    %1355 = vmatpush1.bf16.msra.mxu0 0
    %1356 = vmatprep.subr.bf16.mxu0 0
    %1357 = vmatpush1.bf16.msra.mxu0 0
    %1358 = vmatprep.subr.bf16.mxu0 0
    %1359 = vmatpush1.bf16.msra.mxu0 0
    %1360 = vmatprep.subr.bf16.mxu0 0
    %1361 = vmatpush1.bf16.msra.mxu0 0
    %1362 = vmatprep.subr.bf16.mxu0 0
    %1363 = vmatpush1.bf16.msra.mxu0 0
    %1364 = vmatprep.subr.bf16.mxu0 0
    %1365 = vmatpush1.bf16.msra.mxu0 0
    %1366 = vmatprep.subr.bf16.mxu0 0
    %1367 = vmatpush1.bf16.msra.mxu0 0
    %1368 = vmatprep.subr.bf16.mxu0 0
    %1369 = vmatpush1.bf16.msra.mxu0 0
    %1370 = vmatprep.subr.bf16.mxu0 0
    %1371 = vmatpush1.bf16.msra.mxu0 0
    %1372 = vmatprep.mubr.bf16.mxu0 0
    %1373 = vmatmul.mubr.bf16.gmra.mrb[0].mxu0 %v1331
    %v1374 = vpop.f32.mrb[0].mxu0
    %v1375 = vadd.f32 0.0, %v1374
    %v1376 = vpop.f32.mrb[0].mxu0
    %v1377 = vadd.f32 0.0, %v1376
    %v1378 = vpop.f32.mrb[0].mxu0
    %v1379 = vadd.f32 0.0, %v1378
    %v1380 = vpop.f32.mrb[0].mxu0
    %v1381 = vadd.f32 0.0, %v1380
    %1382 = vdwg.mxu0
    %v1511 = vunpack.c.l.b16 %v1194
    %v1512 = vunpack.c.h.b16 %v1194
    %v1513 = vunpack.c.l.b16 %v1195
    %v1514 = vunpack.c.h.b16 %v1195
    %v1515 = vunpack.c.l.b16 %v1196
    %v1516 = vunpack.c.h.b16 %v1196
    %v1517 = vunpack.c.l.b16 %v1197
    %v1518 = vunpack.c.h.b16 %v1197
    %v1519 = vunpack.c.l.b16 %v1198
    %v1520 = vunpack.c.h.b16 %v1198
    %v1521 = vunpack.c.l.b16 %v1199
    %v1522 = vunpack.c.h.b16 %v1199
    %v1523 = vunpack.c.l.b16 %v1200
    %v1524 = vunpack.c.h.b16 %v1200
    %v1525 = vunpack.c.l.b16 %v1201
    %v1526 = vunpack.c.h.b16 %v1201
    %v1527 = vunpack.c.l.b16 %v1202
    %v1528 = vunpack.c.h.b16 %v1202
    %v1529 = vunpack.c.l.b16 %v1203
    %v1530 = vunpack.c.h.b16 %v1203
    %v1531 = vunpack.c.l.b16 %v1204
    %v1532 = vunpack.c.h.b16 %v1204
    %v1533 = vunpack.c.l.b16 %v1205
    %v1534 = vunpack.c.h.b16 %v1205
    %v1535 = vunpack.c.l.b16 %v1206
    %v1536 = vunpack.c.h.b16 %v1206
    %v1537 = vunpack.c.l.b16 %v1207
    %v1538 = vunpack.c.h.b16 %v1207
    %v1539 = vunpack.c.l.b16 %v1208
    %v1540 = vunpack.c.h.b16 %v1208
    %v1541 = vunpack.c.l.b16 %v1209
    %v1542 = vunpack.c.h.b16 %v1209
    %v1543 = vunpack.c.l.b16 %v1210
    %v1544 = vunpack.c.h.b16 %v1210
    %v1545 = vunpack.c.l.b16 %v1211
    %v1546 = vunpack.c.h.b16 %v1211
    %v1547 = vunpack.c.l.b16 %v1212
    %v1548 = vunpack.c.h.b16 %v1212
    %v1549 = vunpack.c.l.b16 %v1213
    %v1550 = vunpack.c.h.b16 %v1213
    %v1551 = vunpack.c.l.b16 %v1214
    %v1552 = vunpack.c.h.b16 %v1214
    %v1553 = vunpack.c.l.b16 %v1215
    %v1554 = vunpack.c.h.b16 %v1215
    %v1555 = vunpack.c.l.b16 %v1216
    %v1556 = vunpack.c.h.b16 %v1216
    %v1557 = vunpack.c.l.b16 %v1217
    %v1558 = vunpack.c.h.b16 %v1217
    %v1559 = vunpack.c.l.b16 %v1218
    %v1560 = vunpack.c.h.b16 %v1218
    %v1561 = vunpack.c.l.b16 %v1219
    %v1562 = vunpack.c.h.b16 %v1219
    %v1563 = vunpack.c.l.b16 %v1220
    %v1564 = vunpack.c.h.b16 %v1220
    %v1565 = vunpack.c.l.b16 %v1221
    %v1566 = vunpack.c.h.b16 %v1221
    %v1567 = vunpack.c.l.b16 %v1222
    %v1568 = vunpack.c.h.b16 %v1222
    %v1569 = vunpack.c.l.b16 %v1223
    %v1570 = vunpack.c.h.b16 %v1223
    %v1571 = vunpack.c.l.b16 %v1224
    %v1572 = vunpack.c.h.b16 %v1224
    %v1573 = vunpack.c.l.b16 %v1225
    %v1574 = vunpack.c.h.b16 %v1225
    %v1575 = vunpack.c.l.b16 %v1226
    %v1576 = vunpack.c.h.b16 %v1226
    %v1577 = vunpack.c.l.b16 %v1227
    %v1578 = vunpack.c.h.b16 %v1227
    %v1579 = vunpack.c.l.b16 %v1228
    %v1580 = vunpack.c.h.b16 %v1228
    %v1581 = vunpack.c.l.b16 %v1229
    %v1582 = vunpack.c.h.b16 %v1229
    %v1583 = vunpack.c.l.b16 %v1230
    %v1584 = vunpack.c.h.b16 %v1230
    %v1585 = vunpack.c.l.b16 %v1231
    %v1586 = vunpack.c.h.b16 %v1231
    %v1587 = vunpack.c.l.b16 %v1232
    %v1588 = vunpack.c.h.b16 %v1232
    %v1589 = vunpack.c.l.b16 %v1233
    %v1590 = vunpack.c.h.b16 %v1233
    %v1591 = vunpack.c.l.b16 %v1234
    %v1592 = vunpack.c.h.b16 %v1234
    %v1593 = vunpack.c.l.b16 %v1235
    %v1594 = vunpack.c.h.b16 %v1235
    %v1595 = vunpack.c.l.b16 %v1236
    %v1596 = vunpack.c.h.b16 %v1236
    %v1597 = vunpack.c.l.b16 %v1237
    %v1598 = vunpack.c.h.b16 %v1237
    %v1599 = vunpack.c.l.b16 %v1238
    %v1600 = vunpack.c.h.b16 %v1238
    %v1601 = vunpack.c.l.b16 %v1239
    %v1602 = vunpack.c.h.b16 %v1239
    %v1603 = vunpack.c.l.b16 %v1240
    %v1604 = vunpack.c.h.b16 %v1240
    %v1605 = vunpack.c.l.b16 %v1241
    %v1606 = vunpack.c.h.b16 %v1241
    %v1607 = vunpack.c.l.b16 %v1242
    %v1608 = vunpack.c.h.b16 %v1242
    %v1609 = vunpack.c.l.b16 %v1243
    %v1610 = vunpack.c.h.b16 %v1243
    %v1611 = vunpack.c.l.b16 %v1244
    %v1612 = vunpack.c.h.b16 %v1244
    %v1613 = vunpack.c.l.b16 %v1245
    %v1614 = vunpack.c.h.b16 %v1245
    %v1615 = vunpack.c.l.b16 %v1246
    %v1616 = vunpack.c.h.b16 %v1246
    %v1617 = vunpack.c.l.b16 %v1247
    %v1618 = vunpack.c.h.b16 %v1247
    %v1619 = vunpack.c.l.b16 %v1248
    %v1620 = vunpack.c.h.b16 %v1248
    %v1621 = vunpack.c.l.b16 %v1249
    %v1622 = vunpack.c.h.b16 %v1249
    %v1623 = vunpack.c.l.b16 %v1250
    %v1624 = vunpack.c.h.b16 %v1250
    %v1625 = vunpack.c.l.b16 %v1251
    %v1626 = vunpack.c.h.b16 %v1251
    %v1627 = vunpack.c.l.b16 %v1252
    %v1628 = vunpack.c.h.b16 %v1252
    %v1629 = vunpack.c.l.b16 %v1253
    %v1630 = vunpack.c.h.b16 %v1253
    %v1631 = vunpack.c.l.b16 %v1254
    %v1632 = vunpack.c.h.b16 %v1254
    %v1633 = vunpack.c.l.b16 %v1255
    %v1634 = vunpack.c.h.b16 %v1255
    %v1635 = vunpack.c.l.b16 %v1256
    %v1636 = vunpack.c.h.b16 %v1256
    %v1637 = vunpack.c.l.b16 %v1257
    %v1638 = vunpack.c.h.b16 %v1257
    %v1639 = vunpack.c.l.b16 %v1258
    %v1640 = vunpack.c.h.b16 %v1258
    %v1641 = vunpack.c.l.b16 %v1259
    %v1642 = vunpack.c.h.b16 %v1259
    %v1643 = vunpack.c.l.b16 %v1260
    %v1644 = vunpack.c.h.b16 %v1260
    %v1645 = vunpack.c.l.b16 %v1261
    %v1646 = vunpack.c.h.b16 %v1261
    %v1647 = vunpack.c.l.b16 %v1262
    %v1648 = vunpack.c.h.b16 %v1262
    %v1649 = vunpack.c.l.b16 %v1263
    %v1650 = vunpack.c.h.b16 %v1263
    %v1651 = vunpack.c.l.b16 %v1264
    %v1652 = vunpack.c.h.b16 %v1264
    %v1653 = vunpack.c.l.b16 %v1265
    %v1654 = vunpack.c.h.b16 %v1265
    %v1655 = vunpack.c.l.b16 %v1266
    %v1656 = vunpack.c.h.b16 %v1266
    %v1657 = vunpack.c.l.b16 %v1267
    %v1658 = vunpack.c.h.b16 %v1267
    %v1659 = vunpack.c.l.b16 %v1268
    %v1660 = vunpack.c.h.b16 %v1268
    %v1661 = vunpack.c.l.b16 %v1269
    %v1662 = vunpack.c.h.b16 %v1269
    %v1663 = vunpack.c.l.b16 %v1270
    %v1664 = vunpack.c.h.b16 %v1270
    %v1665 = vunpack.c.l.b16 %v1271
    %v1666 = vunpack.c.h.b16 %v1271
    %v1667 = vunpack.c.l.b16 %v1272
    %v1668 = vunpack.c.h.b16 %v1272
    %v1669 = vunpack.c.l.b16 %v1273
    %v1670 = vunpack.c.h.b16 %v1273
    %v1671 = vunpack.c.l.b16 %v1274
    %v1672 = vunpack.c.h.b16 %v1274
    %v1673 = vunpack.c.l.b16 %v1275
    %v1674 = vunpack.c.h.b16 %v1275
    %v1675 = vunpack.c.l.b16 %v1276
    %v1676 = vunpack.c.h.b16 %v1276
    %v1677 = vunpack.c.l.b16 %v1277
    %v1678 = vunpack.c.h.b16 %v1277
    %v1679 = vunpack.c.l.b16 %v1278
    %v1680 = vunpack.c.h.b16 %v1278
    %v1681 = vunpack.c.l.b16 %v1279
    %v1682 = vunpack.c.h.b16 %v1279
    %v1683 = vunpack.c.l.b16 %v1280
    %v1684 = vunpack.c.h.b16 %v1280
    %v1685 = vunpack.c.l.b16 %v1281
    %v1686 = vunpack.c.h.b16 %v1281
    %v1687 = vunpack.c.l.b16 %v1282
    %v1688 = vunpack.c.h.b16 %v1282
    %v1689 = vunpack.c.l.b16 %v1283
    %v1690 = vunpack.c.h.b16 %v1283
    %v1691 = vunpack.c.l.b16 %v1284
    %v1692 = vunpack.c.h.b16 %v1284
    %v1693 = vunpack.c.l.b16 %v1285
    %v1694 = vunpack.c.h.b16 %v1285
    %v1695 = vunpack.c.l.b16 %v1286
    %v1696 = vunpack.c.h.b16 %v1286
    %v1697 = vunpack.c.l.b16 %v1287
    %v1698 = vunpack.c.h.b16 %v1287
    %v1699 = vunpack.c.l.b16 %v1288
    %v1700 = vunpack.c.h.b16 %v1288
    %v1701 = vunpack.c.l.b16 %v1289
    %v1702 = vunpack.c.h.b16 %v1289
    %v1703 = vunpack.c.l.b16 %v1290
    %v1704 = vunpack.c.h.b16 %v1290
    %v1705 = vunpack.c.l.b16 %v1291
    %v1706 = vunpack.c.h.b16 %v1291
    %v1707 = vunpack.c.l.b16 %v1292
    %v1708 = vunpack.c.h.b16 %v1292
    %v1709 = vunpack.c.l.b16 %v1293
    %v1710 = vunpack.c.h.b16 %v1293
    %v1711 = vunpack.c.l.b16 %v1294
    %v1712 = vunpack.c.h.b16 %v1294
    %v1713 = vunpack.c.l.b16 %v1295
    %v1714 = vunpack.c.h.b16 %v1295
    %v1715 = vunpack.c.l.b16 %v1296
    %v1716 = vunpack.c.h.b16 %v1296
    %v1717 = vunpack.c.l.b16 %v1297
    %v1718 = vunpack.c.h.b16 %v1297
    %v1719 = vunpack.c.l.b16 %v1298
    %v1720 = vunpack.c.h.b16 %v1298
    %v1721 = vunpack.c.l.b16 %v1299
    %v1722 = vunpack.c.h.b16 %v1299
    %v1723 = vunpack.c.l.b16 %v1300
    %v1724 = vunpack.c.h.b16 %v1300
    %v1725 = vunpack.c.l.b16 %v1301
    %v1726 = vunpack.c.h.b16 %v1301
    %v1727 = vunpack.c.l.b16 %v1302
    %v1728 = vunpack.c.h.b16 %v1302
    %v1729 = vunpack.c.l.b16 %v1303
    %v1730 = vunpack.c.h.b16 %v1303
    %v1731 = vunpack.c.l.b16 %v1304
    %v1732 = vunpack.c.h.b16 %v1304
    %v1733 = vunpack.c.l.b16 %v1305
    %v1734 = vunpack.c.h.b16 %v1305
    %v1735 = vunpack.c.l.b16 %v1306
    %v1736 = vunpack.c.h.b16 %v1306
    %v1737 = vunpack.c.l.b16 %v1307
    %v1738 = vunpack.c.h.b16 %v1307
    %v1739 = vunpack.c.l.b16 %v1308
    %v1740 = vunpack.c.h.b16 %v1308
    %v1741 = vunpack.c.l.b16 %v1309
    %v1742 = vunpack.c.h.b16 %v1309
    %v1743 = vunpack.c.l.b16 %v1310
    %v1744 = vunpack.c.h.b16 %v1310
    %v1745 = vunpack.c.l.b16 %v1311
    %v1746 = vunpack.c.h.b16 %v1311
    %v1747 = vunpack.c.l.b16 %v1312
    %v1748 = vunpack.c.h.b16 %v1312
    %v1749 = vunpack.c.l.b16 %v1313
    %v1750 = vunpack.c.h.b16 %v1313
    %v1751 = vunpack.c.l.b16 %v1314
    %v1752 = vunpack.c.h.b16 %v1314
    %v1753 = vunpack.c.l.b16 %v1315
    %v1754 = vunpack.c.h.b16 %v1315
    %v1755 = vunpack.c.l.b16 %v1316
    %v1756 = vunpack.c.h.b16 %v1316
    %v1757 = vunpack.c.l.b16 %v1317
    %v1758 = vunpack.c.h.b16 %v1317
    %v1759 = vunpack.c.l.b16 %v1318
    %v1760 = vunpack.c.h.b16 %v1318
    %v1761 = vunpack.c.l.b16 %v1319
    %v1762 = vunpack.c.h.b16 %v1319
    %v1763 = vunpack.c.l.b16 %v1320
    %v1764 = vunpack.c.h.b16 %v1320
    %v1765 = vunpack.c.l.b16 %v1321
    %v1766 = vunpack.c.h.b16 %v1321
    %v1767 = vpack.c.b16 %v1513, %v1511
    %v1768 = vpack.c.b16 %v1514, %v1512
    %v1769 = vpack.c.b16 %v1517, %v1515
    %v1770 = vpack.c.b16 %v1518, %v1516
    %v1771 = vpack.c.b16 %v1521, %v1519
    %v1772 = vpack.c.b16 %v1522, %v1520
    %v1773 = vpack.c.b16 %v1525, %v1523
    %v1774 = vpack.c.b16 %v1526, %v1524
    %v1775 = vpack.c.b16 %v1529, %v1527
    %v1776 = vpack.c.b16 %v1530, %v1528
    %v1777 = vpack.c.b16 %v1533, %v1531
    %v1778 = vpack.c.b16 %v1534, %v1532
    %v1779 = vpack.c.b16 %v1537, %v1535
    %v1780 = vpack.c.b16 %v1538, %v1536
    %v1781 = vpack.c.b16 %v1541, %v1539
    %v1782 = vpack.c.b16 %v1542, %v1540
    %v1783 = vpack.c.b16 %v1545, %v1543
    %v1784 = vpack.c.b16 %v1546, %v1544
    %v1785 = vpack.c.b16 %v1549, %v1547
    %v1786 = vpack.c.b16 %v1550, %v1548
    %v1787 = vpack.c.b16 %v1553, %v1551
    %v1788 = vpack.c.b16 %v1554, %v1552
    %v1789 = vpack.c.b16 %v1557, %v1555
    %v1790 = vpack.c.b16 %v1558, %v1556
    %v1791 = vpack.c.b16 %v1561, %v1559
    %v1792 = vpack.c.b16 %v1562, %v1560
    %v1793 = vpack.c.b16 %v1565, %v1563
    %v1794 = vpack.c.b16 %v1566, %v1564
    %v1795 = vpack.c.b16 %v1569, %v1567
    %v1796 = vpack.c.b16 %v1570, %v1568
    %v1797 = vpack.c.b16 %v1573, %v1571
    %v1798 = vpack.c.b16 %v1574, %v1572
    %v1799 = vpack.c.b16 %v1577, %v1575
    %v1800 = vpack.c.b16 %v1578, %v1576
    %v1801 = vpack.c.b16 %v1581, %v1579
    %v1802 = vpack.c.b16 %v1582, %v1580
    %v1803 = vpack.c.b16 %v1585, %v1583
    %v1804 = vpack.c.b16 %v1586, %v1584
    %v1805 = vpack.c.b16 %v1589, %v1587
    %v1806 = vpack.c.b16 %v1590, %v1588
    %v1807 = vpack.c.b16 %v1593, %v1591
    %v1808 = vpack.c.b16 %v1594, %v1592
    %v1809 = vpack.c.b16 %v1597, %v1595
    %v1810 = vpack.c.b16 %v1598, %v1596
    %v1811 = vpack.c.b16 %v1601, %v1599
    %v1812 = vpack.c.b16 %v1602, %v1600
    %v1813 = vpack.c.b16 %v1605, %v1603
    %v1814 = vpack.c.b16 %v1606, %v1604
    %v1815 = vpack.c.b16 %v1609, %v1607
    %v1816 = vpack.c.b16 %v1610, %v1608
    %v1817 = vpack.c.b16 %v1613, %v1611
    %v1818 = vpack.c.b16 %v1614, %v1612
    %v1819 = vpack.c.b16 %v1617, %v1615
    %v1820 = vpack.c.b16 %v1618, %v1616
    %v1821 = vpack.c.b16 %v1621, %v1619
    %v1822 = vpack.c.b16 %v1622, %v1620
    %v1823 = vpack.c.b16 %v1625, %v1623
    %v1824 = vpack.c.b16 %v1626, %v1624
    %v1825 = vpack.c.b16 %v1629, %v1627
    %v1826 = vpack.c.b16 %v1630, %v1628
    %v1827 = vpack.c.b16 %v1633, %v1631
    %v1828 = vpack.c.b16 %v1634, %v1632
    %v1829 = vpack.c.b16 %v1637, %v1635
    %v1830 = vpack.c.b16 %v1638, %v1636
    %v1831 = vpack.c.b16 %v1641, %v1639
    %v1832 = vpack.c.b16 %v1642, %v1640
    %v1833 = vpack.c.b16 %v1645, %v1643
    %v1834 = vpack.c.b16 %v1646, %v1644
    %v1835 = vpack.c.b16 %v1649, %v1647
    %v1836 = vpack.c.b16 %v1650, %v1648
    %v1837 = vpack.c.b16 %v1653, %v1651
    %v1838 = vpack.c.b16 %v1654, %v1652
    %v1839 = vpack.c.b16 %v1657, %v1655
    %v1840 = vpack.c.b16 %v1658, %v1656
    %v1841 = vpack.c.b16 %v1661, %v1659
    %v1842 = vpack.c.b16 %v1662, %v1660
    %v1843 = vpack.c.b16 %v1665, %v1663
    %v1844 = vpack.c.b16 %v1666, %v1664
    %v1845 = vpack.c.b16 %v1669, %v1667
    %v1846 = vpack.c.b16 %v1670, %v1668
    %v1847 = vpack.c.b16 %v1673, %v1671
    %v1848 = vpack.c.b16 %v1674, %v1672
    %v1849 = vpack.c.b16 %v1677, %v1675
    %v1850 = vpack.c.b16 %v1678, %v1676
    %v1851 = vpack.c.b16 %v1681, %v1679
    %v1852 = vpack.c.b16 %v1682, %v1680
    %v1853 = vpack.c.b16 %v1685, %v1683
    %v1854 = vpack.c.b16 %v1686, %v1684
    %v1855 = vpack.c.b16 %v1689, %v1687
    %v1856 = vpack.c.b16 %v1690, %v1688
    %v1857 = vpack.c.b16 %v1693, %v1691
    %v1858 = vpack.c.b16 %v1694, %v1692
    %v1859 = vpack.c.b16 %v1697, %v1695
    %v1860 = vpack.c.b16 %v1698, %v1696
    %v1861 = vpack.c.b16 %v1701, %v1699
    %v1862 = vpack.c.b16 %v1702, %v1700
    %v1863 = vpack.c.b16 %v1705, %v1703
    %v1864 = vpack.c.b16 %v1706, %v1704
    %v1865 = vpack.c.b16 %v1709, %v1707
    %v1866 = vpack.c.b16 %v1710, %v1708
    %v1867 = vpack.c.b16 %v1713, %v1711
    %v1868 = vpack.c.b16 %v1714, %v1712
    %v1869 = vpack.c.b16 %v1717, %v1715
    %v1870 = vpack.c.b16 %v1718, %v1716
    %v1871 = vpack.c.b16 %v1721, %v1719
    %v1872 = vpack.c.b16 %v1722, %v1720
    %v1873 = vpack.c.b16 %v1725, %v1723
    %v1874 = vpack.c.b16 %v1726, %v1724
    %v1875 = vpack.c.b16 %v1729, %v1727
    %v1876 = vpack.c.b16 %v1730, %v1728
    %v1877 = vpack.c.b16 %v1733, %v1731
    %v1878 = vpack.c.b16 %v1734, %v1732
    %v1879 = vpack.c.b16 %v1737, %v1735
    %v1880 = vpack.c.b16 %v1738, %v1736
    %v1881 = vpack.c.b16 %v1741, %v1739
    %v1882 = vpack.c.b16 %v1742, %v1740
    %v1883 = vpack.c.b16 %v1745, %v1743
    %v1884 = vpack.c.b16 %v1746, %v1744
    %v1885 = vpack.c.b16 %v1749, %v1747
    %v1886 = vpack.c.b16 %v1750, %v1748
    %v1887 = vpack.c.b16 %v1753, %v1751
    %v1888 = vpack.c.b16 %v1754, %v1752
    %v1889 = vpack.c.b16 %v1757, %v1755
    %v1890 = vpack.c.b16 %v1758, %v1756
    %v1891 = vpack.c.b16 %v1761, %v1759
    %v1892 = vpack.c.b16 %v1762, %v1760
    %v1893 = vpack.c.b16 %v1765, %v1763
    %v1894 = vpack.c.b16 %v1766, %v1764
    %2023 = vmatprep.subr.bf16.mxu0 %v1768
    %2024 = vmatpush1.bf16.msra.mxu0 %v1767
    %2025 = vmatprep.subr.bf16.mxu0 %v1770
    %2026 = vmatpush1.bf16.msra.mxu0 %v1769
    %2027 = vmatprep.subr.bf16.mxu0 %v1772
    %2028 = vmatpush1.bf16.msra.mxu0 %v1771
    %2029 = vmatprep.subr.bf16.mxu0 %v1774
    %2030 = vmatpush1.bf16.msra.mxu0 %v1773
    %2031 = vmatprep.subr.bf16.mxu0 %v1776
    %2032 = vmatpush1.bf16.msra.mxu0 %v1775
    %2033 = vmatprep.subr.bf16.mxu0 %v1778
    %2034 = vmatpush1.bf16.msra.mxu0 %v1777
    %2035 = vmatprep.subr.bf16.mxu0 %v1780
    %2036 = vmatpush1.bf16.msra.mxu0 %v1779
    %2037 = vmatprep.subr.bf16.mxu0 %v1782
    %2038 = vmatpush1.bf16.msra.mxu0 %v1781
    %2039 = vmatprep.subr.bf16.mxu0 %v1784
    %2040 = vmatpush1.bf16.msra.mxu0 %v1783
    %2041 = vmatprep.subr.bf16.mxu0 %v1786
    %2042 = vmatpush1.bf16.msra.mxu0 %v1785
    %2043 = vmatprep.subr.bf16.mxu0 %v1788
    %2044 = vmatpush1.bf16.msra.mxu0 %v1787
    %2045 = vmatprep.subr.bf16.mxu0 %v1790
    %2046 = vmatpush1.bf16.msra.mxu0 %v1789
    %2047 = vmatprep.subr.bf16.mxu0 %v1792
    %2048 = vmatpush1.bf16.msra.mxu0 %v1791
    %2049 = vmatprep.subr.bf16.mxu0 %v1794
    %2050 = vmatpush1.bf16.msra.mxu0 %v1793
    %2051 = vmatprep.subr.bf16.mxu0 %v1796
    %2052 = vmatpush1.bf16.msra.mxu0 %v1795
    %2053 = vmatprep.subr.bf16.mxu0 %v1798
    %2054 = vmatpush1.bf16.msra.mxu0 %v1797
    %2055 = vmatprep.mubr.bf16.mxu0 %v1127
    %2056 = vmatmul.mubr.bf16.gmra.mrb[0].mxu0 %v1116
    %v2057 = vpop.f32.mrb[0].mxu0
    %v2058 = vadd.f32 %v1375, %v2057
    %v2059 = vpop.f32.mrb[0].mxu0
    %v2060 = vadd.f32 %v1377, %v2059
    %v2061 = vpop.f32.mrb[0].mxu0
    %v2062 = vadd.f32 %v1379, %v2061
    %v2063 = vpop.f32.mrb[0].mxu0
    %v2064 = vadd.f32 %v1381, %v2063
    %2065 = vdwg.mxu0
    %2066 = vmatprep.subr.bf16.mxu0 %v1800
    %2067 = vmatpush1.bf16.msra.mxu0 %v1799
    %2068 = vmatprep.subr.bf16.mxu0 %v1802
    %2069 = vmatpush1.bf16.msra.mxu0 %v1801
    %2070 = vmatprep.subr.bf16.mxu0 %v1804
    %2071 = vmatpush1.bf16.msra.mxu0 %v1803
    %2072 = vmatprep.subr.bf16.mxu0 %v1806
    %2073 = vmatpush1.bf16.msra.mxu0 %v1805
    %2074 = vmatprep.subr.bf16.mxu0 %v1808
    %2075 = vmatpush1.bf16.msra.mxu0 %v1807
    %2076 = vmatprep.subr.bf16.mxu0 %v1810
    %2077 = vmatpush1.bf16.msra.mxu0 %v1809
    %2078 = vmatprep.subr.bf16.mxu0 %v1812
    %2079 = vmatpush1.bf16.msra.mxu0 %v1811
    %2080 = vmatprep.subr.bf16.mxu0 %v1814
    %2081 = vmatpush1.bf16.msra.mxu0 %v1813
    %2082 = vmatprep.subr.bf16.mxu0 %v1816
    %2083 = vmatpush1.bf16.msra.mxu0 %v1815
    %2084 = vmatprep.subr.bf16.mxu0 %v1818
    %2085 = vmatpush1.bf16.msra.mxu0 %v1817
    %2086 = vmatprep.subr.bf16.mxu0 %v1820
    %2087 = vmatpush1.bf16.msra.mxu0 %v1819
    %2088 = vmatprep.subr.bf16.mxu0 %v1822
    %2089 = vmatpush1.bf16.msra.mxu0 %v1821
    %2090 = vmatprep.subr.bf16.mxu0 %v1824
    %2091 = vmatpush1.bf16.msra.mxu0 %v1823
    %2092 = vmatprep.subr.bf16.mxu0 %v1826
    %2093 = vmatpush1.bf16.msra.mxu0 %v1825
    %2094 = vmatprep.subr.bf16.mxu0 %v1828
    %2095 = vmatpush1.bf16.msra.mxu0 %v1827
    %2096 = vmatprep.subr.bf16.mxu0 %v1830
    %2097 = vmatpush1.bf16.msra.mxu0 %v1829
    %2098 = vmatprep.mubr.bf16.mxu0 %v1149
    %2099 = vmatmul.mubr.bf16.gmra.mrb[0].mxu0 %v1138
    %v2100 = vpop.f32.mrb[0].mxu0
    %v2101 = vadd.f32 %v2058, %v2100
    %v2102 = vpop.f32.mrb[0].mxu0
    %v2103 = vadd.f32 %v2060, %v2102
    %v2104 = vpop.f32.mrb[0].mxu0
    %v2105 = vadd.f32 %v2062, %v2104
    %v2106 = vpop.f32.mrb[0].mxu0
    %v2107 = vadd.f32 %v2064, %v2106
    %2108 = vdwg.mxu0
    %2109 = vmatprep.subr.bf16.mxu0 %v1832
    %2110 = vmatpush1.bf16.msra.mxu0 %v1831
    %2111 = vmatprep.subr.bf16.mxu0 %v1834
    %2112 = vmatpush1.bf16.msra.mxu0 %v1833
    %2113 = vmatprep.subr.bf16.mxu0 %v1836
    %2114 = vmatpush1.bf16.msra.mxu0 %v1835
    %2115 = vmatprep.subr.bf16.mxu0 %v1838
    %2116 = vmatpush1.bf16.msra.mxu0 %v1837
    %2117 = vmatprep.subr.bf16.mxu0 %v1840
    %2118 = vmatpush1.bf16.msra.mxu0 %v1839
    %2119 = vmatprep.subr.bf16.mxu0 %v1842
    %2120 = vmatpush1.bf16.msra.mxu0 %v1841
    %2121 = vmatprep.subr.bf16.mxu0 %v1844
    %2122 = vmatpush1.bf16.msra.mxu0 %v1843
    %2123 = vmatprep.subr.bf16.mxu0 %v1846
    %2124 = vmatpush1.bf16.msra.mxu0 %v1845
    %2125 = vmatprep.subr.bf16.mxu0 %v1848
    %2126 = vmatpush1.bf16.msra.mxu0 %v1847
    %2127 = vmatprep.subr.bf16.mxu0 %v1850
    %2128 = vmatpush1.bf16.msra.mxu0 %v1849
    %2129 = vmatprep.subr.bf16.mxu0 %v1852
    %2130 = vmatpush1.bf16.msra.mxu0 %v1851
    %2131 = vmatprep.subr.bf16.mxu0 %v1854
    %2132 = vmatpush1.bf16.msra.mxu0 %v1853
    %2133 = vmatprep.subr.bf16.mxu0 %v1856
    %2134 = vmatpush1.bf16.msra.mxu0 %v1855
    %2135 = vmatprep.subr.bf16.mxu0 %v1858
    %2136 = vmatpush1.bf16.msra.mxu0 %v1857
    %2137 = vmatprep.subr.bf16.mxu0 %v1860
    %2138 = vmatpush1.bf16.msra.mxu0 %v1859
    %2139 = vmatprep.subr.bf16.mxu0 %v1862
    %2140 = vmatpush1.bf16.msra.mxu0 %v1861
    %2141 = vmatprep.mubr.bf16.mxu0 %v1171
    %2142 = vmatmul.mubr.bf16.gmra.mrb[0].mxu0 %v1160
    %v2143 = vpop.f32.mrb[0].mxu0
    %v2144 = vadd.f32 %v2101, %v2143
    %v2145 = vpop.f32.mrb[0].mxu0
    %v2146 = vadd.f32 %v2103, %v2145
    %v2147 = vpop.f32.mrb[0].mxu0
    %v2148 = vadd.f32 %v2105, %v2147
    %v2149 = vpop.f32.mrb[0].mxu0
    %v2150 = vadd.f32 %v2107, %v2149
    %2151 = vdwg.mxu0
    %2152 = vmatprep.subr.bf16.mxu0 %v1864
    %2153 = vmatpush1.bf16.msra.mxu0 %v1863
    %2154 = vmatprep.subr.bf16.mxu0 %v1866
    %2155 = vmatpush1.bf16.msra.mxu0 %v1865
    %2156 = vmatprep.subr.bf16.mxu0 %v1868
    %2157 = vmatpush1.bf16.msra.mxu0 %v1867
    %2158 = vmatprep.subr.bf16.mxu0 %v1870
    %2159 = vmatpush1.bf16.msra.mxu0 %v1869
    %2160 = vmatprep.subr.bf16.mxu0 %v1872
    %2161 = vmatpush1.bf16.msra.mxu0 %v1871
    %2162 = vmatprep.subr.bf16.mxu0 %v1874
    %2163 = vmatpush1.bf16.msra.mxu0 %v1873
    %2164 = vmatprep.subr.bf16.mxu0 %v1876
    %2165 = vmatpush1.bf16.msra.mxu0 %v1875
    %2166 = vmatprep.subr.bf16.mxu0 %v1878
    %2167 = vmatpush1.bf16.msra.mxu0 %v1877
    %2168 = vmatprep.subr.bf16.mxu0 %v1880
    %2169 = vmatpush1.bf16.msra.mxu0 %v1879
    %2170 = vmatprep.subr.bf16.mxu0 %v1882
    %2171 = vmatpush1.bf16.msra.mxu0 %v1881
    %2172 = vmatprep.subr.bf16.mxu0 %v1884
    %2173 = vmatpush1.bf16.msra.mxu0 %v1883
    %2174 = vmatprep.subr.bf16.mxu0 %v1886
    %2175 = vmatpush1.bf16.msra.mxu0 %v1885
    %2176 = vmatprep.subr.bf16.mxu0 %v1888
    %2177 = vmatpush1.bf16.msra.mxu0 %v1887
    %2178 = vmatprep.subr.bf16.mxu0 %v1890
    %2179 = vmatpush1.bf16.msra.mxu0 %v1889
    %2180 = vmatprep.subr.bf16.mxu0 %v1892
    %2181 = vmatpush1.bf16.msra.mxu0 %v1891
    %2182 = vmatprep.subr.bf16.mxu0 %v1894
    %2183 = vmatpush1.bf16.msra.mxu0 %v1893
    %2184 = vmatprep.mubr.bf16.mxu0 %v1193
    %2185 = vmatmul.mubr.bf16.gmra.mrb[0].mxu0 %v1182
    %v2186 = vpop.f32.mrb[0].mxu0
    %v2187 = vadd.f32 %v2144, %v2186
    %v2188 = vpop.f32.mrb[0].mxu0
    %v2189 = vadd.f32 %v2146, %v2188
    %v2190 = vpop.f32.mrb[0].mxu0
    %v2191 = vadd.f32 %v2148, %v2190
    %v2192 = vpop.f32.mrb[0].mxu0
    %v2193 = vadd.f32 %v2150, %v2192
    %2194 = vdwg.mxu0
    %v2195 = vld [vmem:[#allocation7] sm:$0xff]
    %v2196 = vld [vmem:[#allocation7 + $0x8] sm:$0xff]
    %v2197 = vld [vmem:[#allocation7 + $0x10] sm:$0xff]
    %v2198 = vld [vmem:[#allocation7 + $0x18] sm:$0xff]
    %v2199 = vld [vmem:[#allocation7 + $0x20] sm:$0xff]
    %v2200 = vld [vmem:[#allocation7 + $0x28] sm:$0xff]
    %v2201 = vld [vmem:[#allocation7 + $0x30] sm:$0xff]
    %v2202 = vld [vmem:[#allocation7 + $0x38] sm:$0xff]
    %v2203 = vld [vmem:[#allocation7 + $0x40] sm:$0xff]
    %v2204 = vld [vmem:[#allocation7 + $0x48] sm:$0xff]
    %v2205 = vld [vmem:[#allocation7 + $0x50] sm:$0xff]
    %v2206 = vld [vmem:[#allocation7 + $0x58] sm:$0xff]
    %v2207 = vld [vmem:[#allocation7 + $0x60] sm:$0xff]
    %v2208 = vld [vmem:[#allocation7 + $0x68] sm:$0xff]
    %v2209 = vld [vmem:[#allocation7 + $0x70] sm:$0xff]
    %v2210 = vld [vmem:[#allocation7 + $0x78] sm:$0xff]
    %v2211 = vld [vmem:[#allocation7 + $0x80] sm:$0xff]
    %v2212 = vld [vmem:[#allocation7 + $0x88] sm:$0xff]
    %v2213 = vld [vmem:[#allocation7 + $0x90] sm:$0xff]
    %v2214 = vld [vmem:[#allocation7 + $0x98] sm:$0xff]
    %v2215 = vld [vmem:[#allocation7 + $0xa0] sm:$0xff]
    %v2216 = vld [vmem:[#allocation7 + $0xa8] sm:$0xff]
    %v2217 = vld [vmem:[#allocation7 + $0xb0] sm:$0xff]
    %v2218 = vld [vmem:[#allocation7 + $0xb8] sm:$0xff]
    %v2219 = vld [vmem:[#allocation7 + $0xc0] sm:$0xff]
    %v2220 = vld [vmem:[#allocation7 + $0xc8] sm:$0xff]
    %v2221 = vld [vmem:[#allocation7 + $0xd0] sm:$0xff]
    %v2222 = vld [vmem:[#allocation7 + $0xd8] sm:$0xff]
    %v2223 = vld [vmem:[#allocation7 + $0xe0] sm:$0xff]
    %v2224 = vld [vmem:[#allocation7 + $0xe8] sm:$0xff]
    %v2225 = vld [vmem:[#allocation7 + $0xf0] sm:$0xff]
    %v2226 = vld [vmem:[#allocation7 + $0xf8] sm:$0xff]
    %v2227 = vld [vmem:[#allocation7 + $0x100] sm:$0xff]
    %v2228 = vld [vmem:[#allocation7 + $0x108] sm:$0xff]
    %v2229 = vld [vmem:[#allocation7 + $0x110] sm:$0xff]
    %v2230 = vld [vmem:[#allocation7 + $0x118] sm:$0xff]
    %v2231 = vld [vmem:[#allocation7 + $0x120] sm:$0xff]
    %v2232 = vld [vmem:[#allocation7 + $0x128] sm:$0xff]
    %v2233 = vld [vmem:[#allocation7 + $0x130] sm:$0xff]
    %v2234 = vld [vmem:[#allocation7 + $0x138] sm:$0xff]
    %v2235 = vld [vmem:[#allocation7 + $0x140] sm:$0xff]
    %v2236 = vld [vmem:[#allocation7 + $0x148] sm:$0xff]
    %v2237 = vld [vmem:[#allocation7 + $0x150] sm:$0xff]
    %v2238 = vld [vmem:[#allocation7 + $0x158] sm:$0xff]
    %v2239 = vld [vmem:[#allocation7 + $0x160] sm:$0xff]
    %v2240 = vld [vmem:[#allocation7 + $0x168] sm:$0xff]
    %v2241 = vld [vmem:[#allocation7 + $0x170] sm:$0xff]
    %v2242 = vld [vmem:[#allocation7 + $0x178] sm:$0xff]
    %v2243 = vld [vmem:[#allocation7 + $0x180] sm:$0xff]
    %v2244 = vld [vmem:[#allocation7 + $0x188] sm:$0xff]
    %v2245 = vld [vmem:[#allocation7 + $0x190] sm:$0xff]
    %v2246 = vld [vmem:[#allocation7 + $0x198] sm:$0xff]
    %v2247 = vld [vmem:[#allocation7 + $0x1a0] sm:$0xff]
    %v2248 = vld [vmem:[#allocation7 + $0x1a8] sm:$0xff]
    %v2249 = vld [vmem:[#allocation7 + $0x1b0] sm:$0xff]
    %v2250 = vld [vmem:[#allocation7 + $0x1b8] sm:$0xff]
    %v2251 = vld [vmem:[#allocation7 + $0x1c0] sm:$0xff]
    %v2252 = vld [vmem:[#allocation7 + $0x1c8] sm:$0xff]
    %v2253 = vld [vmem:[#allocation7 + $0x1d0] sm:$0xff]
    %v2254 = vld [vmem:[#allocation7 + $0x1d8] sm:$0xff]
    %v2255 = vld [vmem:[#allocation7 + $0x1e0] sm:$0xff]
    %v2256 = vld [vmem:[#allocation7 + $0x1e8] sm:$0xff]
    %v2257 = vld [vmem:[#allocation7 + $0x1f0] sm:$0xff]
    %v2258 = vld [vmem:[#allocation7 + $0x1f8] sm:$0xff]
    %v2259 = vld [vmem:[%s7] sm:$0xf]
    %v2261 = vlaneseq
    %v2262 = vshrl.u32 %v2261, 7
    %v2263 = vsub.s32 0, %v2262
    %v2264 = vrot.slane %v2259, %v2263
    %v2265 = vlaneseq
    %v2266 = vshrl.u32 %v2265, 7
    %v2267 = vsub.s32 1, %v2266
    %v2268 = vrot.slane %v2259, %v2267
    %v2269 = vlaneseq
    %v2270 = vshrl.u32 %v2269, 7
    %v2271 = vsub.s32 2, %v2270
    %v2272 = vrot.slane %v2259, %v2271
    %v2273 = vlaneseq
    %v2274 = vshrl.u32 %v2273, 7
    %v2275 = vsub.s32 3, %v2274
    %v2276 = vrot.slane %v2259, %v2275
    %v2345 = vunpack.c.l.b16 %v2195
    %v2346 = vunpack.c.h.b16 %v2195
    %v2347 = vunpack.c.l.b16 %v2196
    %v2348 = vunpack.c.h.b16 %v2196
    %v2349 = vunpack.c.l.b16 %v2197
    %v2350 = vunpack.c.h.b16 %v2197
    %v2351 = vunpack.c.l.b16 %v2198
    %v2352 = vunpack.c.h.b16 %v2198
    %v2353 = vunpack.c.l.b16 %v2199
    %v2354 = vunpack.c.h.b16 %v2199
    %v2355 = vunpack.c.l.b16 %v2200
    %v2356 = vunpack.c.h.b16 %v2200
    %v2357 = vunpack.c.l.b16 %v2201
    %v2358 = vunpack.c.h.b16 %v2201
    %v2359 = vunpack.c.l.b16 %v2202
    %v2360 = vunpack.c.h.b16 %v2202
    %v2361 = vunpack.c.l.b16 %v2203
    %v2362 = vunpack.c.h.b16 %v2203
    %v2363 = vunpack.c.l.b16 %v2204
    %v2364 = vunpack.c.h.b16 %v2204
    %v2365 = vunpack.c.l.b16 %v2205
    %v2366 = vunpack.c.h.b16 %v2205
    %v2367 = vunpack.c.l.b16 %v2206
    %v2368 = vunpack.c.h.b16 %v2206
    %v2369 = vunpack.c.l.b16 %v2207
    %v2370 = vunpack.c.h.b16 %v2207
    %v2371 = vunpack.c.l.b16 %v2208
    %v2372 = vunpack.c.h.b16 %v2208
    %v2373 = vunpack.c.l.b16 %v2209
    %v2374 = vunpack.c.h.b16 %v2209
    %v2375 = vunpack.c.l.b16 %v2210
    %v2376 = vunpack.c.h.b16 %v2210
    %v2377 = vunpack.c.l.b16 %v2211
    %v2378 = vunpack.c.h.b16 %v2211
    %v2379 = vunpack.c.l.b16 %v2212
    %v2380 = vunpack.c.h.b16 %v2212
    %v2381 = vunpack.c.l.b16 %v2213
    %v2382 = vunpack.c.h.b16 %v2213
    %v2383 = vunpack.c.l.b16 %v2214
    %v2384 = vunpack.c.h.b16 %v2214
    %v2385 = vunpack.c.l.b16 %v2215
    %v2386 = vunpack.c.h.b16 %v2215
    %v2387 = vunpack.c.l.b16 %v2216
    %v2388 = vunpack.c.h.b16 %v2216
    %v2389 = vunpack.c.l.b16 %v2217
    %v2390 = vunpack.c.h.b16 %v2217
    %v2391 = vunpack.c.l.b16 %v2218
    %v2392 = vunpack.c.h.b16 %v2218
    %v2393 = vunpack.c.l.b16 %v2219
    %v2394 = vunpack.c.h.b16 %v2219
    %v2395 = vunpack.c.l.b16 %v2220
    %v2396 = vunpack.c.h.b16 %v2220
    %v2397 = vunpack.c.l.b16 %v2221
    %v2398 = vunpack.c.h.b16 %v2221
    %v2399 = vunpack.c.l.b16 %v2222
    %v2400 = vunpack.c.h.b16 %v2222
    %v2401 = vunpack.c.l.b16 %v2223
    %v2402 = vunpack.c.h.b16 %v2223
    %v2403 = vunpack.c.l.b16 %v2224
    %v2404 = vunpack.c.h.b16 %v2224
    %v2405 = vunpack.c.l.b16 %v2225
    %v2406 = vunpack.c.h.b16 %v2225
    %v2407 = vunpack.c.l.b16 %v2226
    %v2408 = vunpack.c.h.b16 %v2226
    %v2409 = vunpack.c.l.b16 %v2227
    %v2410 = vunpack.c.h.b16 %v2227
    %v2411 = vunpack.c.l.b16 %v2228
    %v2412 = vunpack.c.h.b16 %v2228
    %v2413 = vunpack.c.l.b16 %v2229
    %v2414 = vunpack.c.h.b16 %v2229
    %v2415 = vunpack.c.l.b16 %v2230
    %v2416 = vunpack.c.h.b16 %v2230
    %v2417 = vunpack.c.l.b16 %v2231
    %v2418 = vunpack.c.h.b16 %v2231
    %v2419 = vunpack.c.l.b16 %v2232
    %v2420 = vunpack.c.h.b16 %v2232
    %v2421 = vunpack.c.l.b16 %v2233
    %v2422 = vunpack.c.h.b16 %v2233
    %v2423 = vunpack.c.l.b16 %v2234
    %v2424 = vunpack.c.h.b16 %v2234
    %v2425 = vunpack.c.l.b16 %v2235
    %v2426 = vunpack.c.h.b16 %v2235
    %v2427 = vunpack.c.l.b16 %v2236
    %v2428 = vunpack.c.h.b16 %v2236
    %v2429 = vunpack.c.l.b16 %v2237
    %v2430 = vunpack.c.h.b16 %v2237
    %v2431 = vunpack.c.l.b16 %v2238
    %v2432 = vunpack.c.h.b16 %v2238
    %v2433 = vunpack.c.l.b16 %v2239
    %v2434 = vunpack.c.h.b16 %v2239
    %v2435 = vunpack.c.l.b16 %v2240
    %v2436 = vunpack.c.h.b16 %v2240
    %v2437 = vunpack.c.l.b16 %v2241
    %v2438 = vunpack.c.h.b16 %v2241
    %v2439 = vunpack.c.l.b16 %v2242
    %v2440 = vunpack.c.h.b16 %v2242
    %v2441 = vunpack.c.l.b16 %v2243
    %v2442 = vunpack.c.h.b16 %v2243
    %v2443 = vunpack.c.l.b16 %v2244
    %v2444 = vunpack.c.h.b16 %v2244
    %v2445 = vunpack.c.l.b16 %v2245
    %v2446 = vunpack.c.h.b16 %v2245
    %v2447 = vunpack.c.l.b16 %v2246
    %v2448 = vunpack.c.h.b16 %v2246
    %v2449 = vunpack.c.l.b16 %v2247
    %v2450 = vunpack.c.h.b16 %v2247
    %v2451 = vunpack.c.l.b16 %v2248
    %v2452 = vunpack.c.h.b16 %v2248
    %v2453 = vunpack.c.l.b16 %v2249
    %v2454 = vunpack.c.h.b16 %v2249
    %v2455 = vunpack.c.l.b16 %v2250
    %v2456 = vunpack.c.h.b16 %v2250
    %v2457 = vunpack.c.l.b16 %v2251
    %v2458 = vunpack.c.h.b16 %v2251
    %v2459 = vunpack.c.l.b16 %v2252
    %v2460 = vunpack.c.h.b16 %v2252
    %v2461 = vunpack.c.l.b16 %v2253
    %v2462 = vunpack.c.h.b16 %v2253
    %v2463 = vunpack.c.l.b16 %v2254
    %v2464 = vunpack.c.h.b16 %v2254
    %v2465 = vunpack.c.l.b16 %v2255
    %v2466 = vunpack.c.h.b16 %v2255
    %v2467 = vunpack.c.l.b16 %v2256
    %v2468 = vunpack.c.h.b16 %v2256
    %v2469 = vunpack.c.l.b16 %v2257
    %v2470 = vunpack.c.h.b16 %v2257
    %v2471 = vunpack.c.l.b16 %v2258
    %v2472 = vunpack.c.h.b16 %v2258
    %v2473 = vpack.c.b16 %v2349, %v2345
    %v2474 = vpack.c.b16 %v2350, %v2346
    %v2475 = vpack.c.b16 %v2351, %v2347
    %v2476 = vpack.c.b16 %v2352, %v2348
    %v2477 = vpack.c.b16 %v2357, %v2353
    %v2478 = vpack.c.b16 %v2358, %v2354
    %v2479 = vpack.c.b16 %v2359, %v2355
    %v2480 = vpack.c.b16 %v2360, %v2356
    %v2481 = vpack.c.b16 %v2365, %v2361
    %v2482 = vpack.c.b16 %v2366, %v2362
    %v2483 = vpack.c.b16 %v2367, %v2363
    %v2484 = vpack.c.b16 %v2368, %v2364
    %v2485 = vpack.c.b16 %v2373, %v2369
    %v2486 = vpack.c.b16 %v2374, %v2370
    %v2487 = vpack.c.b16 %v2375, %v2371
    %v2488 = vpack.c.b16 %v2376, %v2372
    %v2489 = vpack.c.b16 %v2381, %v2377
    %v2490 = vpack.c.b16 %v2382, %v2378
    %v2491 = vpack.c.b16 %v2383, %v2379
    %v2492 = vpack.c.b16 %v2384, %v2380
    %v2493 = vpack.c.b16 %v2389, %v2385
    %v2494 = vpack.c.b16 %v2390, %v2386
    %v2495 = vpack.c.b16 %v2391, %v2387
    %v2496 = vpack.c.b16 %v2392, %v2388
    %v2497 = vpack.c.b16 %v2397, %v2393
    %v2498 = vpack.c.b16 %v2398, %v2394
    %v2499 = vpack.c.b16 %v2399, %v2395
    %v2500 = vpack.c.b16 %v2400, %v2396
    %v2501 = vpack.c.b16 %v2405, %v2401
    %v2502 = vpack.c.b16 %v2406, %v2402
    %v2503 = vpack.c.b16 %v2407, %v2403
    %v2504 = vpack.c.b16 %v2408, %v2404
    %v2505 = vpack.c.b16 %v2413, %v2409
    %v2506 = vpack.c.b16 %v2414, %v2410
    %v2507 = vpack.c.b16 %v2415, %v2411
    %v2508 = vpack.c.b16 %v2416, %v2412
    %v2509 = vpack.c.b16 %v2421, %v2417
    %v2510 = vpack.c.b16 %v2422, %v2418
    %v2511 = vpack.c.b16 %v2423, %v2419
    %v2512 = vpack.c.b16 %v2424, %v2420
    %v2513 = vpack.c.b16 %v2429, %v2425
    %v2514 = vpack.c.b16 %v2430, %v2426
    %v2515 = vpack.c.b16 %v2431, %v2427
    %v2516 = vpack.c.b16 %v2432, %v2428
    %v2517 = vpack.c.b16 %v2437, %v2433
    %v2518 = vpack.c.b16 %v2438, %v2434
    %v2519 = vpack.c.b16 %v2439, %v2435
    %v2520 = vpack.c.b16 %v2440, %v2436
    %v2521 = vpack.c.b16 %v2445, %v2441
    %v2522 = vpack.c.b16 %v2446, %v2442
    %v2523 = vpack.c.b16 %v2447, %v2443
    %v2524 = vpack.c.b16 %v2448, %v2444
    %v2525 = vpack.c.b16 %v2453, %v2449
    %v2526 = vpack.c.b16 %v2454, %v2450
    %v2527 = vpack.c.b16 %v2455, %v2451
    %v2528 = vpack.c.b16 %v2456, %v2452
    %v2529 = vpack.c.b16 %v2461, %v2457
    %v2530 = vpack.c.b16 %v2462, %v2458
    %v2531 = vpack.c.b16 %v2463, %v2459
    %v2532 = vpack.c.b16 %v2464, %v2460
    %v2533 = vpack.c.b16 %v2469, %v2465
    %v2534 = vpack.c.b16 %v2470, %v2466
    %v2535 = vpack.c.b16 %v2471, %v2467
    %v2536 = vpack.c.b16 %v2472, %v2468
    %2601 = vmatprep.subr.bf16.mxu0 %v2474
    %2602 = vmatpush1.bf16.msra.mxu0 %v2473
    %2603 = vmatprep.subr.bf16.mxu0 %v2478
    %2604 = vmatpush1.bf16.msra.mxu0 %v2477
    %2605 = vmatprep.subr.bf16.mxu0 %v2482
    %2606 = vmatpush1.bf16.msra.mxu0 %v2481
    %2607 = vmatprep.subr.bf16.mxu0 %v2486
    %2608 = vmatpush1.bf16.msra.mxu0 %v2485
    %2609 = vmatprep.subr.bf16.mxu0 %v2490
    %2610 = vmatpush1.bf16.msra.mxu0 %v2489
    %2611 = vmatprep.subr.bf16.mxu0 %v2494
    %2612 = vmatpush1.bf16.msra.mxu0 %v2493
    %2613 = vmatprep.subr.bf16.mxu0 %v2498
    %2614 = vmatpush1.bf16.msra.mxu0 %v2497
    %2615 = vmatprep.subr.bf16.mxu0 %v2502
    %2616 = vmatpush1.bf16.msra.mxu0 %v2501
    %2617 = vmatprep.subr.bf16.mxu0 %v2506
    %2618 = vmatpush1.bf16.msra.mxu0 %v2505
    %2619 = vmatprep.subr.bf16.mxu0 %v2510
    %2620 = vmatpush1.bf16.msra.mxu0 %v2509
    %2621 = vmatprep.subr.bf16.mxu0 %v2514
    %2622 = vmatpush1.bf16.msra.mxu0 %v2513
    %2623 = vmatprep.subr.bf16.mxu0 %v2518
    %2624 = vmatpush1.bf16.msra.mxu0 %v2517
    %2625 = vmatprep.subr.bf16.mxu0 %v2522
    %2626 = vmatpush1.bf16.msra.mxu0 %v2521
    %2627 = vmatprep.subr.bf16.mxu0 %v2526
    %2628 = vmatpush1.bf16.msra.mxu0 %v2525
    %2629 = vmatprep.subr.bf16.mxu0 %v2530
    %2630 = vmatpush1.bf16.msra.mxu0 %v2529
    %2631 = vmatprep.subr.bf16.mxu0 %v2534
    %2632 = vmatpush1.bf16.msra.mxu0 %v2533
    %2633 = vmatprep.mubr.bf16.mxu0 %v273
    %2634 = vmatmul.mubr.bf16.gmra.mrb[0].mxu0 %v272
    %v2635 = vpop.f32.mrb[0].mxu0
    %v2636 = vadd.f32 %v2264, %v2635
    %v2637 = vpop.f32.mrb[0].mxu0
    %v2638 = vadd.f32 %v2268, %v2637
    %v2639 = vpop.f32.mrb[0].mxu0
    %v2640 = vadd.f32 %v2264, %v2639
    %v2641 = vpop.f32.mrb[0].mxu0
    %v2642 = vadd.f32 %v2268, %v2641
    %2643 = vdwg.mxu0
    %2644 = vmatprep.subr.bf16.mxu0 %v2476
    %2645 = vmatpush1.bf16.msra.mxu0 %v2475
    %2646 = vmatprep.subr.bf16.mxu0 %v2480
    %2647 = vmatpush1.bf16.msra.mxu0 %v2479
    %2648 = vmatprep.subr.bf16.mxu0 %v2484
    %2649 = vmatpush1.bf16.msra.mxu0 %v2483
    %2650 = vmatprep.subr.bf16.mxu0 %v2488
    %2651 = vmatpush1.bf16.msra.mxu0 %v2487
    %2652 = vmatprep.subr.bf16.mxu0 %v2492
    %2653 = vmatpush1.bf16.msra.mxu0 %v2491
    %2654 = vmatprep.subr.bf16.mxu0 %v2496
    %2655 = vmatpush1.bf16.msra.mxu0 %v2495
    %2656 = vmatprep.subr.bf16.mxu0 %v2500
    %2657 = vmatpush1.bf16.msra.mxu0 %v2499
    %2658 = vmatprep.subr.bf16.mxu0 %v2504
    %2659 = vmatpush1.bf16.msra.mxu0 %v2503
    %2660 = vmatprep.subr.bf16.mxu0 %v2508
    %2661 = vmatpush1.bf16.msra.mxu0 %v2507
    %2662 = vmatprep.subr.bf16.mxu0 %v2512
    %2663 = vmatpush1.bf16.msra.mxu0 %v2511
    %2664 = vmatprep.subr.bf16.mxu0 %v2516
    %2665 = vmatpush1.bf16.msra.mxu0 %v2515
    %2666 = vmatprep.subr.bf16.mxu0 %v2520
    %2667 = vmatpush1.bf16.msra.mxu0 %v2519
    %2668 = vmatprep.subr.bf16.mxu0 %v2524
    %2669 = vmatpush1.bf16.msra.mxu0 %v2523
    %2670 = vmatprep.subr.bf16.mxu0 %v2528
    %2671 = vmatpush1.bf16.msra.mxu0 %v2527
    %2672 = vmatprep.subr.bf16.mxu0 %v2532
    %2673 = vmatpush1.bf16.msra.mxu0 %v2531
    %2674 = vmatprep.subr.bf16.mxu0 %v2536
    %2675 = vmatpush1.bf16.msra.mxu0 %v2535
    %2676 = vmatprep.mubr.bf16.mxu0 %v273
    %2677 = vmatmul.mubr.bf16.gmra.mrb[0].mxu0 %v272
    %v2678 = vpop.f32.mrb[0].mxu0
    %v2679 = vadd.f32 %v2272, %v2678
    %v2680 = vpop.f32.mrb[0].mxu0
    %v2681 = vadd.f32 %v2276, %v2680
    %v2682 = vpop.f32.mrb[0].mxu0
    %v2683 = vadd.f32 %v2272, %v2682
    %v2684 = vpop.f32.mrb[0].mxu0
    %v2685 = vadd.f32 %v2276, %v2684
    %2686 = vdwg.mxu0
    %v2687 = vmax.f32 %v2636, 0.0
    %v2688 = vmax.f32 %v2638, 0.0
    %v2689 = vmax.f32 %v2679, 0.0
    %v2690 = vmax.f32 %v2681, 0.0
    %v2691 = vmax.f32 %v2640, 0.0
    %v2692 = vmax.f32 %v2642, 0.0
    %v2693 = vmax.f32 %v2683, 0.0
    %v2694 = vmax.f32 %v2685, 0.0
    %v2695 = vpack.c.bf16 %v2691, %v2687
    %v2696 = vpack.c.bf16 %v2692, %v2688
    %v2697 = vpack.c.bf16 %v2693, %v2689
    %v2698 = vpack.c.bf16 %v2694, %v2690
    %v2699 = vld [vmem:[#allocation8] sm:$0xff]
    %v2700 = vld [vmem:[#allocation8 + $0x8] sm:$0xff]
    %v2701 = vld [vmem:[#allocation8 + $0x10] sm:$0xff]
    %v2702 = vld [vmem:[#allocation8 + $0x18] sm:$0xff]
    %v2703 = vld [vmem:[#allocation8 + $0x20] sm:$0xff]
    %v2704 = vld [vmem:[#allocation8 + $0x28] sm:$0xff]
    %v2705 = vld [vmem:[#allocation8 + $0x30] sm:$0xff]
    %v2706 = vld [vmem:[#allocation8 + $0x38] sm:$0xff]
    %v2707 = vld [vmem:[#allocation8 + $0x40] sm:$0xff]
    %v2708 = vld [vmem:[#allocation8 + $0x48] sm:$0xff]
    %v2709 = vld [vmem:[#allocation8 + $0x50] sm:$0xff]
    %v2710 = vld [vmem:[#allocation8 + $0x58] sm:$0xff]
    %v2711 = vld [vmem:[#allocation8 + $0x60] sm:$0xff]
    %v2712 = vld [vmem:[#allocation8 + $0x68] sm:$0xff]
    %v2713 = vld [vmem:[#allocation8 + $0x70] sm:$0xff]
    %v2714 = vld [vmem:[#allocation8 + $0x78] sm:$0xff]
    %v2715 = vld [vmem:[#allocation8 + $0x80] sm:$0xff]
    %v2716 = vld [vmem:[#allocation8 + $0x88] sm:$0xff]
    %v2717 = vld [vmem:[#allocation8 + $0x90] sm:$0xff]
    %v2718 = vld [vmem:[#allocation8 + $0x98] sm:$0xff]
    %v2719 = vld [vmem:[#allocation8 + $0xa0] sm:$0xff]
    %v2720 = vld [vmem:[#allocation8 + $0xa8] sm:$0xff]
    %v2721 = vld [vmem:[#allocation8 + $0xb0] sm:$0xff]
    %v2722 = vld [vmem:[#allocation8 + $0xb8] sm:$0xff]
    %v2723 = vld [vmem:[#allocation8 + $0xc0] sm:$0xff]
    %v2724 = vld [vmem:[#allocation8 + $0xc8] sm:$0xff]
    %v2725 = vld [vmem:[#allocation8 + $0xd0] sm:$0xff]
    %v2726 = vld [vmem:[#allocation8 + $0xd8] sm:$0xff]
    %v2727 = vld [vmem:[#allocation8 + $0xe0] sm:$0xff]
    %v2728 = vld [vmem:[#allocation8 + $0xe8] sm:$0xff]
    %v2729 = vld [vmem:[#allocation8 + $0xf0] sm:$0xff]
    %v2730 = vld [vmem:[#allocation8 + $0xf8] sm:$0xff]
    %v2731 = vld [vmem:[#allocation8 + $0x100] sm:$0xff]
    %v2732 = vld [vmem:[#allocation8 + $0x108] sm:$0xff]
    %v2733 = vld [vmem:[#allocation8 + $0x110] sm:$0xff]
    %v2734 = vld [vmem:[#allocation8 + $0x118] sm:$0xff]
    %v2735 = vld [vmem:[#allocation8 + $0x120] sm:$0xff]
    %v2736 = vld [vmem:[#allocation8 + $0x128] sm:$0xff]
    %v2737 = vld [vmem:[#allocation8 + $0x130] sm:$0xff]
    %v2738 = vld [vmem:[#allocation8 + $0x138] sm:$0xff]
    %v2739 = vld [vmem:[#allocation8 + $0x140] sm:$0xff]
    %v2740 = vld [vmem:[#allocation8 + $0x148] sm:$0xff]
    %v2741 = vld [vmem:[#allocation8 + $0x150] sm:$0xff]
    %v2742 = vld [vmem:[#allocation8 + $0x158] sm:$0xff]
    %v2743 = vld [vmem:[#allocation8 + $0x160] sm:$0xff]
    %v2744 = vld [vmem:[#allocation8 + $0x168] sm:$0xff]
    %v2745 = vld [vmem:[#allocation8 + $0x170] sm:$0xff]
    %v2746 = vld [vmem:[#allocation8 + $0x178] sm:$0xff]
    %v2747 = vld [vmem:[#allocation8 + $0x180] sm:$0xff]
    %v2748 = vld [vmem:[#allocation8 + $0x188] sm:$0xff]
    %v2749 = vld [vmem:[#allocation8 + $0x190] sm:$0xff]
    %v2750 = vld [vmem:[#allocation8 + $0x198] sm:$0xff]
    %v2751 = vld [vmem:[#allocation8 + $0x1a0] sm:$0xff]
    %v2752 = vld [vmem:[#allocation8 + $0x1a8] sm:$0xff]
    %v2753 = vld [vmem:[#allocation8 + $0x1b0] sm:$0xff]
    %v2754 = vld [vmem:[#allocation8 + $0x1b8] sm:$0xff]
    %v2755 = vld [vmem:[#allocation8 + $0x1c0] sm:$0xff]
    %v2756 = vld [vmem:[#allocation8 + $0x1c8] sm:$0xff]
    %v2757 = vld [vmem:[#allocation8 + $0x1d0] sm:$0xff]
    %v2758 = vld [vmem:[#allocation8 + $0x1d8] sm:$0xff]
    %v2759 = vld [vmem:[#allocation8 + $0x1e0] sm:$0xff]
    %v2760 = vld [vmem:[#allocation8 + $0x1e8] sm:$0xff]
    %v2761 = vld [vmem:[#allocation8 + $0x1f0] sm:$0xff]
    %v2762 = vld [vmem:[#allocation8 + $0x1f8] sm:$0xff]
    %v2827 = vunpack.c.l.b16 %v2699
    %v2828 = vunpack.c.h.b16 %v2699
    %v2829 = vunpack.c.l.b16 %v2700
    %v2830 = vunpack.c.h.b16 %v2700
    %v2831 = vunpack.c.l.b16 %v2701
    %v2832 = vunpack.c.h.b16 %v2701
    %v2833 = vunpack.c.l.b16 %v2702
    %v2834 = vunpack.c.h.b16 %v2702
    %v2835 = vunpack.c.l.b16 %v2703
    %v2836 = vunpack.c.h.b16 %v2703
    %v2837 = vunpack.c.l.b16 %v2704
    %v2838 = vunpack.c.h.b16 %v2704
    %v2839 = vunpack.c.l.b16 %v2705
    %v2840 = vunpack.c.h.b16 %v2705
    %v2841 = vunpack.c.l.b16 %v2706
    %v2842 = vunpack.c.h.b16 %v2706
    %v2843 = vunpack.c.l.b16 %v2707
    %v2844 = vunpack.c.h.b16 %v2707
    %v2845 = vunpack.c.l.b16 %v2708
    %v2846 = vunpack.c.h.b16 %v2708
    %v2847 = vunpack.c.l.b16 %v2709
    %v2848 = vunpack.c.h.b16 %v2709
    %v2849 = vunpack.c.l.b16 %v2710
    %v2850 = vunpack.c.h.b16 %v2710
    %v2851 = vunpack.c.l.b16 %v2711
    %v2852 = vunpack.c.h.b16 %v2711
    %v2853 = vunpack.c.l.b16 %v2712
    %v2854 = vunpack.c.h.b16 %v2712
    %v2855 = vunpack.c.l.b16 %v2713
    %v2856 = vunpack.c.h.b16 %v2713
    %v2857 = vunpack.c.l.b16 %v2714
    %v2858 = vunpack.c.h.b16 %v2714
    %v2859 = vunpack.c.l.b16 %v2715
    %v2860 = vunpack.c.h.b16 %v2715
    %v2861 = vunpack.c.l.b16 %v2716
    %v2862 = vunpack.c.h.b16 %v2716
    %v2863 = vunpack.c.l.b16 %v2717
    %v2864 = vunpack.c.h.b16 %v2717
    %v2865 = vunpack.c.l.b16 %v2718
    %v2866 = vunpack.c.h.b16 %v2718
    %v2867 = vunpack.c.l.b16 %v2719
    %v2868 = vunpack.c.h.b16 %v2719
    %v2869 = vunpack.c.l.b16 %v2720
    %v2870 = vunpack.c.h.b16 %v2720
    %v2871 = vunpack.c.l.b16 %v2721
    %v2872 = vunpack.c.h.b16 %v2721
    %v2873 = vunpack.c.l.b16 %v2722
    %v2874 = vunpack.c.h.b16 %v2722
    %v2875 = vunpack.c.l.b16 %v2723
    %v2876 = vunpack.c.h.b16 %v2723
    %v2877 = vunpack.c.l.b16 %v2724
    %v2878 = vunpack.c.h.b16 %v2724
    %v2879 = vunpack.c.l.b16 %v2725
    %v2880 = vunpack.c.h.b16 %v2725
    %v2881 = vunpack.c.l.b16 %v2726
    %v2882 = vunpack.c.h.b16 %v2726
    %v2883 = vunpack.c.l.b16 %v2727
    %v2884 = vunpack.c.h.b16 %v2727
    %v2885 = vunpack.c.l.b16 %v2728
    %v2886 = vunpack.c.h.b16 %v2728
    %v2887 = vunpack.c.l.b16 %v2729
    %v2888 = vunpack.c.h.b16 %v2729
    %v2889 = vunpack.c.l.b16 %v2730
    %v2890 = vunpack.c.h.b16 %v2730
    %v2891 = vunpack.c.l.b16 %v2731
    %v2892 = vunpack.c.h.b16 %v2731
    %v2893 = vunpack.c.l.b16 %v2732
    %v2894 = vunpack.c.h.b16 %v2732
    %v2895 = vunpack.c.l.b16 %v2733
    %v2896 = vunpack.c.h.b16 %v2733
    %v2897 = vunpack.c.l.b16 %v2734
    %v2898 = vunpack.c.h.b16 %v2734
    %v2899 = vunpack.c.l.b16 %v2735
    %v2900 = vunpack.c.h.b16 %v2735
    %v2901 = vunpack.c.l.b16 %v2736
    %v2902 = vunpack.c.h.b16 %v2736
    %v2903 = vunpack.c.l.b16 %v2737
    %v2904 = vunpack.c.h.b16 %v2737
    %v2905 = vunpack.c.l.b16 %v2738
    %v2906 = vunpack.c.h.b16 %v2738
    %v2907 = vunpack.c.l.b16 %v2739
    %v2908 = vunpack.c.h.b16 %v2739
    %v2909 = vunpack.c.l.b16 %v2740
    %v2910 = vunpack.c.h.b16 %v2740
    %v2911 = vunpack.c.l.b16 %v2741
    %v2912 = vunpack.c.h.b16 %v2741
    %v2913 = vunpack.c.l.b16 %v2742
    %v2914 = vunpack.c.h.b16 %v2742
    %v2915 = vunpack.c.l.b16 %v2743
    %v2916 = vunpack.c.h.b16 %v2743
    %v2917 = vunpack.c.l.b16 %v2744
    %v2918 = vunpack.c.h.b16 %v2744
    %v2919 = vunpack.c.l.b16 %v2745
    %v2920 = vunpack.c.h.b16 %v2745
    %v2921 = vunpack.c.l.b16 %v2746
    %v2922 = vunpack.c.h.b16 %v2746
    %v2923 = vunpack.c.l.b16 %v2747
    %v2924 = vunpack.c.h.b16 %v2747
    %v2925 = vunpack.c.l.b16 %v2748
    %v2926 = vunpack.c.h.b16 %v2748
    %v2927 = vunpack.c.l.b16 %v2749
    %v2928 = vunpack.c.h.b16 %v2749
    %v2929 = vunpack.c.l.b16 %v2750
    %v2930 = vunpack.c.h.b16 %v2750
    %v2931 = vunpack.c.l.b16 %v2751
    %v2932 = vunpack.c.h.b16 %v2751
    %v2933 = vunpack.c.l.b16 %v2752
    %v2934 = vunpack.c.h.b16 %v2752
    %v2935 = vunpack.c.l.b16 %v2753
    %v2936 = vunpack.c.h.b16 %v2753
    %v2937 = vunpack.c.l.b16 %v2754
    %v2938 = vunpack.c.h.b16 %v2754
    %v2939 = vunpack.c.l.b16 %v2755
    %v2940 = vunpack.c.h.b16 %v2755
    %v2941 = vunpack.c.l.b16 %v2756
    %v2942 = vunpack.c.h.b16 %v2756
    %v2943 = vunpack.c.l.b16 %v2757
    %v2944 = vunpack.c.h.b16 %v2757
    %v2945 = vunpack.c.l.b16 %v2758
    %v2946 = vunpack.c.h.b16 %v2758
    %v2947 = vunpack.c.l.b16 %v2759
    %v2948 = vunpack.c.h.b16 %v2759
    %v2949 = vunpack.c.l.b16 %v2760
    %v2950 = vunpack.c.h.b16 %v2760
    %v2951 = vunpack.c.l.b16 %v2761
    %v2952 = vunpack.c.h.b16 %v2761
    %v2953 = vunpack.c.l.b16 %v2762
    %v2954 = vunpack.c.h.b16 %v2762
    %v2955 = vpack.c.b16 %v2829, %v2827
    %v2956 = vpack.c.b16 %v2830, %v2828
    %v2957 = vpack.c.b16 %v2833, %v2831
    %v2958 = vpack.c.b16 %v2834, %v2832
    %v2959 = vpack.c.b16 %v2837, %v2835
    %v2960 = vpack.c.b16 %v2838, %v2836
    %v2961 = vpack.c.b16 %v2841, %v2839
    %v2962 = vpack.c.b16 %v2842, %v2840
    %v2963 = vpack.c.b16 %v2845, %v2843
    %v2964 = vpack.c.b16 %v2846, %v2844
    %v2965 = vpack.c.b16 %v2849, %v2847
    %v2966 = vpack.c.b16 %v2850, %v2848
    %v2967 = vpack.c.b16 %v2853, %v2851
    %v2968 = vpack.c.b16 %v2854, %v2852
    %v2969 = vpack.c.b16 %v2857, %v2855
    %v2970 = vpack.c.b16 %v2858, %v2856
    %v2971 = vpack.c.b16 %v2861, %v2859
    %v2972 = vpack.c.b16 %v2862, %v2860
    %v2973 = vpack.c.b16 %v2865, %v2863
    %v2974 = vpack.c.b16 %v2866, %v2864
    %v2975 = vpack.c.b16 %v2869, %v2867
    %v2976 = vpack.c.b16 %v2870, %v2868
    %v2977 = vpack.c.b16 %v2873, %v2871
    %v2978 = vpack.c.b16 %v2874, %v2872
    %v2979 = vpack.c.b16 %v2877, %v2875
    %v2980 = vpack.c.b16 %v2878, %v2876
    %v2981 = vpack.c.b16 %v2881, %v2879
    %v2982 = vpack.c.b16 %v2882, %v2880
    %v2983 = vpack.c.b16 %v2885, %v2883
    %v2984 = vpack.c.b16 %v2886, %v2884
    %v2985 = vpack.c.b16 %v2889, %v2887
    %v2986 = vpack.c.b16 %v2890, %v2888
    %v2987 = vpack.c.b16 %v2893, %v2891
    %v2988 = vpack.c.b16 %v2894, %v2892
    %v2989 = vpack.c.b16 %v2897, %v2895
    %v2990 = vpack.c.b16 %v2898, %v2896
    %v2991 = vpack.c.b16 %v2901, %v2899
    %v2992 = vpack.c.b16 %v2902, %v2900
    %v2993 = vpack.c.b16 %v2905, %v2903
    %v2994 = vpack.c.b16 %v2906, %v2904
    %v2995 = vpack.c.b16 %v2909, %v2907
    %v2996 = vpack.c.b16 %v2910, %v2908
    %v2997 = vpack.c.b16 %v2913, %v2911
    %v2998 = vpack.c.b16 %v2914, %v2912
    %v2999 = vpack.c.b16 %v2917, %v2915
    %v3000 = vpack.c.b16 %v2918, %v2916
    %v3001 = vpack.c.b16 %v2921, %v2919
    %v3002 = vpack.c.b16 %v2922, %v2920
    %v3003 = vpack.c.b16 %v2925, %v2923
    %v3004 = vpack.c.b16 %v2926, %v2924
    %v3005 = vpack.c.b16 %v2929, %v2927
    %v3006 = vpack.c.b16 %v2930, %v2928
    %v3007 = vpack.c.b16 %v2933, %v2931
    %v3008 = vpack.c.b16 %v2934, %v2932
    %v3009 = vpack.c.b16 %v2937, %v2935
    %v3010 = vpack.c.b16 %v2938, %v2936
    %v3011 = vpack.c.b16 %v2941, %v2939
    %v3012 = vpack.c.b16 %v2942, %v2940
    %v3013 = vpack.c.b16 %v2945, %v2943
    %v3014 = vpack.c.b16 %v2946, %v2944
    %v3015 = vpack.c.b16 %v2949, %v2947
    %v3016 = vpack.c.b16 %v2950, %v2948
    %v3017 = vpack.c.b16 %v2953, %v2951
    %v3018 = vpack.c.b16 %v2954, %v2952
    %3083 = vmatprep.subr.bf16.mxu0 %v2956
    %3084 = vmatpush1.bf16.msra.mxu0 %v2955
    %3085 = vmatprep.subr.bf16.mxu0 %v2958
    %3086 = vmatpush1.bf16.msra.mxu0 %v2957
    %3087 = vmatprep.subr.bf16.mxu0 %v2960
    %3088 = vmatpush1.bf16.msra.mxu0 %v2959
    %3089 = vmatprep.subr.bf16.mxu0 %v2962
    %3090 = vmatpush1.bf16.msra.mxu0 %v2961
    %3091 = vmatprep.subr.bf16.mxu0 %v2964
    %3092 = vmatpush1.bf16.msra.mxu0 %v2963
    %3093 = vmatprep.subr.bf16.mxu0 %v2966
    %3094 = vmatpush1.bf16.msra.mxu0 %v2965
    %3095 = vmatprep.subr.bf16.mxu0 %v2968
    %3096 = vmatpush1.bf16.msra.mxu0 %v2967
    %3097 = vmatprep.subr.bf16.mxu0 %v2970
    %3098 = vmatpush1.bf16.msra.mxu0 %v2969
    %3099 = vmatprep.subr.bf16.mxu0 %v2972
    %3100 = vmatpush1.bf16.msra.mxu0 %v2971
    %3101 = vmatprep.subr.bf16.mxu0 %v2974
    %3102 = vmatpush1.bf16.msra.mxu0 %v2973
    %3103 = vmatprep.subr.bf16.mxu0 %v2976
    %3104 = vmatpush1.bf16.msra.mxu0 %v2975
    %3105 = vmatprep.subr.bf16.mxu0 %v2978
    %3106 = vmatpush1.bf16.msra.mxu0 %v2977
    %3107 = vmatprep.subr.bf16.mxu0 %v2980
    %3108 = vmatpush1.bf16.msra.mxu0 %v2979
    %3109 = vmatprep.subr.bf16.mxu0 %v2982
    %3110 = vmatpush1.bf16.msra.mxu0 %v2981
    %3111 = vmatprep.subr.bf16.mxu0 %v2984
    %3112 = vmatpush1.bf16.msra.mxu0 %v2983
    %3113 = vmatprep.subr.bf16.mxu0 %v2986
    %3114 = vmatpush1.bf16.msra.mxu0 %v2985
    %3115 = vmatprep.mubr.bf16.mxu0 %v2696
    %3116 = vmatmul.mubr.bf16.gmra.mrb[0].mxu0 %v2695
    %v3117 = vpop.f32.mrb[0].mxu0
    %v3118 = vadd.f32 0.0, %v3117
    %v3119 = vpop.f32.mrb[0].mxu0
    %v3120 = vadd.f32 0.0, %v3119
    %v3121 = vpop.f32.mrb[0].mxu0
    %v3122 = vadd.f32 0.0, %v3121
    %v3123 = vpop.f32.mrb[0].mxu0
    %v3124 = vadd.f32 0.0, %v3123
    %3125 = vdwg.mxu0
    %3126 = vmatprep.subr.bf16.mxu0 %v2988
    %3127 = vmatpush1.bf16.msra.mxu0 %v2987
    %3128 = vmatprep.subr.bf16.mxu0 %v2990
    %3129 = vmatpush1.bf16.msra.mxu0 %v2989
    %3130 = vmatprep.subr.bf16.mxu0 %v2992
    %3131 = vmatpush1.bf16.msra.mxu0 %v2991
    %3132 = vmatprep.subr.bf16.mxu0 %v2994
    %3133 = vmatpush1.bf16.msra.mxu0 %v2993
    %3134 = vmatprep.subr.bf16.mxu0 %v2996
    %3135 = vmatpush1.bf16.msra.mxu0 %v2995
    %3136 = vmatprep.subr.bf16.mxu0 %v2998
    %3137 = vmatpush1.bf16.msra.mxu0 %v2997
    %3138 = vmatprep.subr.bf16.mxu0 %v3000
    %3139 = vmatpush1.bf16.msra.mxu0 %v2999
    %3140 = vmatprep.subr.bf16.mxu0 %v3002
    %3141 = vmatpush1.bf16.msra.mxu0 %v3001
    %3142 = vmatprep.subr.bf16.mxu0 %v3004
    %3143 = vmatpush1.bf16.msra.mxu0 %v3003
    %3144 = vmatprep.subr.bf16.mxu0 %v3006
    %3145 = vmatpush1.bf16.msra.mxu0 %v3005
    %3146 = vmatprep.subr.bf16.mxu0 %v3008
    %3147 = vmatpush1.bf16.msra.mxu0 %v3007
    %3148 = vmatprep.subr.bf16.mxu0 %v3010
    %3149 = vmatpush1.bf16.msra.mxu0 %v3009
    %3150 = vmatprep.subr.bf16.mxu0 %v3012
    %3151 = vmatpush1.bf16.msra.mxu0 %v3011
    %3152 = vmatprep.subr.bf16.mxu0 %v3014
    %3153 = vmatpush1.bf16.msra.mxu0 %v3013
    %3154 = vmatprep.subr.bf16.mxu0 %v3016
    %3155 = vmatpush1.bf16.msra.mxu0 %v3015
    %3156 = vmatprep.subr.bf16.mxu0 %v3018
    %3157 = vmatpush1.bf16.msra.mxu0 %v3017
    %3158 = vmatprep.mubr.bf16.mxu0 %v2698
    %3159 = vmatmul.mubr.bf16.gmra.mrb[0].mxu0 %v2697
    %v3160 = vpop.f32.mrb[0].mxu0
    %v3161 = vadd.f32 %v3118, %v3160
    %v3162 = vpop.f32.mrb[0].mxu0
    %v3163 = vadd.f32 %v3120, %v3162
    %v3164 = vpop.f32.mrb[0].mxu0
    %v3165 = vadd.f32 %v3122, %v3164
    %v3166 = vpop.f32.mrb[0].mxu0
    %v3167 = vadd.f32 %v3124, %v3166
    %3168 = vdwg.mxu0
    %v3169 = vadd.f32 %v2187, %v3161
    %v3170 = vadd.f32 %v2189, %v3163
    %v3171 = vadd.f32 %v2191, %v3165
    %v3172 = vadd.f32 %v2193, %v3167
    %v3173 = vld [vmem:[%s9] sm:$0x3]
    %v3175 = vlaneseq
    %v3176 = vshrl.u32 %v3175, 7
    %v3177 = vsub.s32 0, %v3176
    %v3178 = vrot.slane %v3173, %v3177
    %v3179 = vlaneseq
    %v3180 = vshrl.u32 %v3179, 7
    %v3181 = vsub.s32 1, %v3180
    %v3182 = vrot.slane %v3173, %v3181
    %v3185 = vadd.f32 %v3169, %v3178
    %v3186 = vadd.f32 %v3170, %v3182
    %v3187 = vadd.f32 %v3171, %v3178
    %v3188 = vadd.f32 %v3172, %v3182
    %3189 = vst [vmem:[#allocation10] sm:$0xff] %v3185
    %3190 = vst [vmem:[#allocation10 + $0x8] sm:$0xff] %v3186
    %3191 = vst [vmem:[#allocation10 + $0x10] sm:$0xff] %v3187
    %3192 = vst [vmem:[#allocation10 + $0x18] sm:$0xff] %v3188
    // Predicated region
    $region58: #{ffn_moe_forward.1} parent=1 // pred_check
      _
    $region59: #{ffn_moe_forward.1} parent=1 // pred_check_branch
      %3194 = sbr.rel (0) target = $region61
    $region60: #{ffn_moe_forward.1} parent=1 // pred_region
      %s3196 = ssub.s32 512, 512
      %3197 = vsyncadd [#allocation4], %s3196
      %s3198 = sshll.u32 [#allocation10], 4
      %s3199 = int_to_ptr.vmem [resolvable:$true] %s3198
      %3204 = dma.vmem_to_hbm [thread:$0]  %s3199, 512, %s10, [#allocation4], 256, 256, 16
    $region61: #{ffn_moe_forward.1} parent=1 // pred_fallthru
      _
    // Predicated region
    $region62: #{ffn_moe_forward.1} parent=1 // pred_check
      _
    $region63: #{ffn_moe_forward.1} parent=1 // pred_check_branch
      %3206 = sbr.rel (0) target = $region65
    $region64: #{ffn_moe_forward.1} parent=1 // pred_region
      %3207 = dma.done [#allocation4], 512
    $region65: #{ffn_moe_forward.1} parent=1 // pred_fallthru
      _
    %3208 = vsyncpa [#allocation3], 1
    %3209 = vsyncpa [#allocation6], 1
    %3210 = vsyncpa [#allocation9], 1
    %3211 = vsyncpa [#allocation4], 1

</llo_original>
